<compile_context>
chip_gen: v5e
topology: v5e:2x2
jax: 0.10.0
libtpu: 0.0.40
codegen_flags: <defaults>
</compile_context>

<pallas_src>
import functools
import math

import jax
import jax.numpy as jnp
from jax.experimental import pallas as pl
from jax.experimental.pallas import tpu as pltpu


# --------------------------- VMEM budget (per gen) ---------------------------
@functools.lru_cache(maxsize=None)
def _vmem_limit_bytes():
    """~3/4 of physical VMEM, capped at 100 MiB (96 MiB v5e/v6e, 48 MiB v7x)."""
    cap = 128 * 1024 * 1024
    try:
        cap = int(getattr(pltpu.get_tpu_info(), "vmem_capacity_bytes", cap))
    except Exception:   # conservative fallback if the query is unavailable
        pass
    return int(min((cap * 3) // 4, 100 * 1024 * 1024))


_STACK_KEYS = ("ln1_g", "ln1_b", "wqkv", "bqkv", "wo", "bo",
               "ln2_g", "ln2_b", "w1", "b1", "w2", "b2")


# --------------------------- Fused decoder stack -----------------------------
def decoder_stack_kernel(x_ref, ln1_g_ref, ln1_b_ref, wqkv_ref, bqkv_ref,
                         wo_ref, bo_ref, ln2_g_ref, ln2_b_ref,
                         w1_ref, b1_ref, w2_ref, b2_ref,
                         o_ref, res_ref, *, n_heads, seq_len):
    layer = pl.program_id(1)

    # Layer 0 of each row tile: load the residual stream into VMEM scratch.
    @pl.when(layer == 0)
    def _():
        res_ref[...] = x_ref[...].astype(jnp.float32)

    x = res_ref[...]                                  # (rows, E) f32
    rows, emb = x.shape
    n_seq = rows // seq_len
    head_dim = emb // n_heads
    scale = 1.0 / math.sqrt(head_dim)

    def layernorm(v, g, b):                           # f32 math
        mu = jnp.mean(v, axis=-1, keepdims=True)
        var = jnp.mean((v - mu) ** 2, axis=-1, keepdims=True)
        return (v - mu) * jax.lax.rsqrt(var + 1e-5) * g + b

    # ---- multi-head causal self-attention (pre-LN) ----
    xn = layernorm(x, ln1_g_ref[...], ln1_b_ref[...]).astype(jnp.bfloat16)

    # Single fused lane-dense QKV projection: (rows, E) x (E, 3E).
    qkv = (jnp.dot(xn, wqkv_ref[...], preferred_element_type=jnp.float32)
           + bqkv_ref[...])
    qkv = qkv.astype(jnp.bfloat16)

    rr = jax.lax.broadcasted_iota(jnp.int32, (seq_len, seq_len), 0)
    cc = jax.lax.broadcasted_iota(jnp.int32, (seq_len, seq_len), 1)
    causal = cc <= rr                                 # (T, T); broadcasts over batch

    # Per-head scores from static slices of the fused QKV output (no per-head
    # projection matmuls).  mask / softmax stay f32.
    ctx_heads = []
    for h in range(n_heads):
        lo = h * head_dim
        qh = qkv[:, lo:lo + head_dim].reshape(n_seq, seq_len, head_dim)
        kh = qkv[:, emb + lo:emb + lo + head_dim].reshape(n_seq, seq_len, head_dim)
        vh = qkv[:, 2 * emb + lo:2 * emb + lo + head_dim].reshape(
            n_seq, seq_len, head_dim)

        s = jnp.einsum('bqd,bkd->bqk', qh, kh,
                       preferred_element_type=jnp.float32) * scale
        s = jnp.where(causal, s, -1e30)
        m = jnp.max(s, axis=-1, keepdims=True)
        p = jnp.exp(s - m)
        p = p * pl.reciprocal(jnp.sum(p, axis=-1, keepdims=True), approx=True)
        ctx = jnp.einsum('bqk,bkd->bqd', p.astype(jnp.bfloat16), vh,
                         preferred_element_type=jnp.float32)
        ctx_heads.append(ctx.reshape(rows, head_dim))

    # Single output projection against the unsplit Wo (no per-head accumulation).
    ctx2d = jnp.concatenate(ctx_heads, axis=-1).astype(jnp.bfloat16)
    attn = (jnp.dot(ctx2d, wo_ref[...], preferred_element_type=jnp.float32)
            + bo_ref[...])
    x = x + attn                                      # residual 1 (dropout = identity)

    # ---- feed-forward (pre-LN, GELU) ----
    xn2 = layernorm(x, ln2_g_ref[...], ln2_b_ref[...]).astype(jnp.bfloat16)
    h1 = (jnp.dot(xn2, w1_ref[...], preferred_element_type=jnp.float32)
          + b1_ref[...])
    h1 = jax.nn.gelu(h1).astype(jnp.bfloat16)
    h2 = (jnp.dot(h1, w2_ref[...], preferred_element_type=jnp.float32)
          + b2_ref[...])
    x = x + h2                                        # residual 2

    res_ref[...] = x                                  # carry to next layer (VMEM)

    @pl.when(layer == pl.num_programs(1) - 1)
    def _():
        o_ref[...] = x.astype(o_ref.dtype)


def _decoder_row_tile(n_batch, seq_len, cap_rows=256):
    """Largest whole-sequence row tile <= cap_rows (>=2 grid steps for v7x)."""
    best = None
    for bp in range(1, n_batch + 1):
        rows = bp * seq_len
        if n_batch % bp == 0 and rows <= cap_rows and rows % 8 == 0:
            best = rows
    return best if best is not None else n_batch * seq_len


def decoder_stack(x2d, stack, *, n_heads, seq_len):
    rows, emb = x2d.shape
    n_layers = stack["wqkv"].shape[0]
    row_tile = _decoder_row_tile(rows // seq_len, seq_len)
    grid = (rows // row_tile, n_layers)

    def wspec(arr):
        _, d1, d2 = arr.shape                         # leading layer axis squeezed
        return pl.BlockSpec((None, d1, d2), lambda r, l: (l, 0, 0))

    in_specs = ([pl.BlockSpec((row_tile, emb), lambda r, l: (r, 0))]
                + [wspec(stack[k]) for k in _STACK_KEYS])

    return pl.pallas_call(
        functools.partial(decoder_stack_kernel, n_heads=n_heads, seq_len=seq_len),
        out_shape=jax.ShapeDtypeStruct((rows, emb), jnp.float32),
        grid=grid,
        in_specs=in_specs,
        out_specs=pl.BlockSpec((row_tile, emb), lambda r, l: (r, 0)),
        scratch_shapes=[pltpu.VMEM((row_tile, emb), jnp.float32)],
        compiler_params=pltpu.CompilerParams(
            dimension_semantics=("parallel", "arbitrary"),
            vmem_limit_bytes=_vmem_limit_bytes()),
    )(x2d, *[stack[k] for k in _STACK_KEYS])


# ------------------------------- Head kernels --------------------------------
def head_stats_kernel(x_ref, w_ref, b_ref, m_ref, l_ref):
    """Pass 1: online running max / sum-exp over vocab tiles (no logits stored)."""
    v_idx = pl.program_id(1)

    @pl.when(v_idx == 0)
    def _():
        m_ref[...] = jnp.full_like(m_ref, -1e30)
        l_ref[...] = jnp.zeros_like(l_ref)

    x = x_ref[...].astype(jnp.bfloat16)
    logits = (jnp.dot(x, w_ref[...], preferred_element_type=jnp.float32)
              + b_ref[...])
    m_prev = m_ref[...]
    m_new = jnp.maximum(m_prev, jnp.max(logits, axis=-1, keepdims=True))
    l_ref[...] = (l_ref[...] * jnp.exp(m_prev - m_new)
                  + jnp.sum(jnp.exp(logits - m_new), axis=-1, keepdims=True))
    m_ref[...] = m_new


def head_probs_kernel(x_ref, w_ref, b_ref, m_ref, l_ref, o_ref):
    """Pass 2: recompute the logits tile and normalize with the final (m, l)."""
    x = x_ref[...].astype(jnp.bfloat16)
    logits = (jnp.dot(x, w_ref[...], preferred_element_type=jnp.float32)
              + b_ref[...])
    p = jnp.exp(logits - m_ref[...])
    o_ref[...] = (p * pl.reciprocal(l_ref[...], approx=True)).astype(o_ref.dtype)


def _head_row_tile(rows):
    for cand in (512, 256, 128, 64, 32, 16, 8):
        if rows % cand == 0:
            return cand
    return rows


def _vocab_tile(vocab):
    for cand in (2048, 1024, 512, 256, 128):
        if vocab % cand == 0:
            return cand
    return vocab


def linear_head(x2d, w, b):
    rows, emb = x2d.shape
    vocab = w.shape[1]
    row_tile = _head_row_tile(rows)
    vocab_tile = _vocab_tile(vocab)
    grid = (rows // row_tile, vocab // vocab_tile)
    vmem = _vmem_limit_bytes()

    m, l = pl.pallas_call(
        head_stats_kernel,
        out_shape=(jax.ShapeDtypeStruct((rows, 1), jnp.float32),
                   jax.ShapeDtypeStruct((rows, 1), jnp.float32)),
        grid=grid,
        in_specs=[pl.BlockSpec((row_tile, emb), lambda r, v: (r, 0)),
                  pl.BlockSpec((emb, vocab_tile), lambda r, v: (0, v)),
                  pl.BlockSpec((1, vocab_tile), lambda r, v: (0, v))],
        out_specs=(pl.BlockSpec((row_tile, 1), lambda r, v: (r, 0)),
                   pl.BlockSpec((row_tile, 1), lambda r, v: (r, 0))),
        compiler_params=pltpu.CompilerParams(
            dimension_semantics=("parallel", "arbitrary"),
            vmem_limit_bytes=vmem),
    )(x2d, w, b)

    return pl.pallas_call(
        head_probs_kernel,
        out_shape=jax.ShapeDtypeStruct((rows, vocab), jnp.float32),
        grid=grid,
        in_specs=[pl.BlockSpec((row_tile, emb), lambda r, v: (r, 0)),
                  pl.BlockSpec((emb, vocab_tile), lambda r, v: (0, v)),
                  pl.BlockSpec((1, vocab_tile), lambda r, v: (0, v)),
                  pl.BlockSpec((row_tile, 1), lambda r, v: (r, 0)),
                  pl.BlockSpec((row_tile, 1), lambda r, v: (r, 0))],
        out_specs=pl.BlockSpec((row_tile, vocab_tile), lambda r, v: (r, v)),
        compiler_params=pltpu.CompilerParams(
            dimension_semantics=("parallel", "parallel"),
            vmem_limit_bytes=vmem),
    )(x2d, w, b, m, l)


# -------------------------------- Full forward --------------------------------
def gpt_forward(tokens, params, *, n_heads):
    n_batch, seq_len = tokens.shape
    emb = params["emb"].shape[1]
    vocab = params["head_w"].shape[1]

    # Embedding lookup + learnt positional encodings (plain JAX glue).
    x = params["emb"][tokens] + params["pos"][None, :, :]          # (B, T, E)
    # dropout(p=0.1) -> identity at inference time
    x2d = x.astype(jnp.float32).reshape(n_batch * seq_len, emb)    # flatten rows

    x2d = decoder_stack(x2d, params["stack"], n_heads=n_heads, seq_len=seq_len)
    probs = linear_head(x2d, params["head_w"], params["head_b"])
    return probs.reshape(n_batch, seq_len, vocab)


# ---------------------------- Deterministic init ------------------------------
def init_params(key, *, vocab, n_tokens, emb, ffn, n_layers, n_heads):
    keys = jax.random.split(key, 4)
    std = 0.02
    params = {
        "emb": std * jax.random.normal(keys[0], (vocab, emb), jnp.float32),
        "pos": jax.random.uniform(keys[1], (n_tokens, emb), jnp.float32),
        "head_w": (std * jax.random.normal(keys[2], (emb, vocab), jnp.float32)
                   ).astype(jnp.bfloat16),
        "head_b": jnp.zeros((1, vocab), jnp.float32),
    }
    per_layer = {k: [] for k in _STACK_KEYS}
    for lk in jax.random.split(keys[3], n_layers):
        k = jax.random.split(lk, 6)
        wq = std * jax.random.normal(k[0], (emb, emb), jnp.float32)
        wk = std * jax.random.normal(k[1], (emb, emb), jnp.float32)
        wv = std * jax.random.normal(k[2], (emb, emb), jnp.float32)
        wo = std * jax.random.normal(k[3], (emb, emb), jnp.float32)
        w1 = std * jax.random.normal(k[4], (emb, ffn), jnp.float32)
        w2 = std * jax.random.normal(k[5], (ffn, emb), jnp.float32)
        layer = {
            "ln1_g": jnp.ones((1, emb), jnp.float32),
            "ln1_b": jnp.zeros((1, emb), jnp.float32),
            "wqkv": jnp.concatenate([wq, wk, wv], axis=1).astype(jnp.bfloat16),
            "bqkv": jnp.zeros((1, 3 * emb), jnp.float32),
            "wo": wo.astype(jnp.bfloat16),
            "bo": jnp.zeros((1, emb), jnp.float32),
            "ln2_g": jnp.ones((1, emb), jnp.float32),
            "ln2_b": jnp.zeros((1, emb), jnp.float32),
            "w1": w1.astype(jnp.bfloat16),
            "b1": jnp.zeros((1, ffn), jnp.float32),
            "w2": w2.astype(jnp.bfloat16),
            "b2": jnp.zeros((1, emb), jnp.float32),
        }
        for kk in _STACK_KEYS:
            per_layer[kk].append(layer[kk])
    params["stack"] = {kk: jnp.stack(v, axis=0) for kk, v in per_layer.items()}
    return params


if __name__ == "__main__":
    # Small, forward-consistent shapes
    batch = 2
    n_tokens = 8            # seq length (== positional-table rows)
    embedding_size = 32
    n_attention_heads = 4
    ffn_inner_layer = 64
    n_decoders = 2
    vocabulary_size = 128

    key = jax.random.PRNGKey(0)
    pkey, tkey = jax.random.split(key)
    params = init_params(pkey, vocab=vocabulary_size, n_tokens=n_tokens,
                         emb=embedding_size, ffn=ffn_inner_layer,
                         n_layers=n_decoders, n_heads=n_attention_heads)
    tokens = jax.random.randint(tkey, (batch, n_tokens), 0, vocabulary_size,
                                dtype=jnp.int32)

    fwd = jax.jit(functools.partial(gpt_forward, n_heads=n_attention_heads))
    out = jax.block_until_ready(fwd(tokens, params))

    assert out.shape == (batch, n_tokens, vocabulary_size)
    # softmax rows sum to 1 (approx reciprocal in the head normalization)
    assert bool(jnp.allclose(jnp.sum(out, axis=-1), 1.0, atol=1e-2))
    print("KERNEL_OK")
</pallas_src>

<mosaic_0001>
module attributes {stable_mosaic.version = 11 : i64} {
  func.func @head_stats_kernel(%arg0: i32, %arg1: i32, %arg2: memref<16x32xf32, #tpu.memory_space<vmem>>, %arg3: memref<32x128xbf16, #tpu.memory_space<vmem>>, %arg4: memref<1x128xf32, #tpu.memory_space<vmem>>, %arg5: memref<16x1xf32, #tpu.memory_space<vmem>>, %arg6: memref<16x1xf32, #tpu.memory_space<vmem>>) attributes {dimension_semantics = [#tpu.dimension_semantics<parallel>, #tpu.dimension_semantics<arbitrary>], iteration_bounds = array<i64: 1, 1>, scalar_prefetch = 0 : i64, scratch_operands = 0 : i64, tpu.core_type = #tpu.core_type<tc>, window_params = [{transform_indices = @transform_0, window_bounds = array<i64: 16, 32>}, {transform_indices = @transform_1, window_bounds = array<i64: 32, 128>}, {transform_indices = @transform_2, window_bounds = array<i64: 1, 128>}, {transform_indices = @transform_3, window_bounds = array<i64: 16, 1>}, {transform_indices = @transform_4, window_bounds = array<i64: 16, 1>}]} {
    %c0_i32 = arith.constant 0 : i32
    %0 = arith.cmpi eq, %arg1, %c0_i32 : i32
    %1 = arith.extui %0 : i1 to i32
    %c0_i32_0 = arith.constant 0 : i32
    %2 = arith.cmpi ne, %1, %c0_i32_0 : i32
    scf.if %2 {
      %cst_16 = arith.constant -1.000000e+30 : f32
      %26 = vector.broadcast %cst_16 : f32 to vector<16x1xf32>
      %c0_17 = arith.constant 0 : index
      %c0_18 = arith.constant 0 : index
      %27 = vector.load %arg5[%c0_17, %c0_18] : memref<16x1xf32, #tpu.memory_space<vmem>>, vector<16x1xf32>
      tpu.vector_store %arg5[%c0_17, %c0_18], %26 {strides = array<i32>} : memref<16x1xf32, #tpu.memory_space<vmem>>, vector<16x1xf32>,
      %cst_19 = arith.constant 0.000000e+00 : f32
      %28 = vector.broadcast %cst_19 : f32 to vector<16x1xf32>
      %c0_20 = arith.constant 0 : index
      %c0_21 = arith.constant 0 : index
      %29 = vector.load %arg6[%c0_20, %c0_21] : memref<16x1xf32, #tpu.memory_space<vmem>>, vector<16x1xf32>
      tpu.vector_store %arg6[%c0_20, %c0_21], %28 {strides = array<i32>} : memref<16x1xf32, #tpu.memory_space<vmem>>, vector<16x1xf32>,
    } else {
    }
    %c0 = arith.constant 0 : index
    %c0_1 = arith.constant 0 : index
    %3 = vector.load %arg2[%c0, %c0_1] : memref<16x32xf32, #tpu.memory_space<vmem>>, vector<16x32xf32>
    %4 = arith.truncf %3 : vector<16x32xf32> to vector<16x32xbf16>
    %c0_2 = arith.constant 0 : index
    %c0_3 = arith.constant 0 : index
    %5 = vector.load %arg3[%c0_2, %c0_3] : memref<32x128xbf16, #tpu.memory_space<vmem>>, vector<32x128xbf16>
    %cst = arith.constant dense<0.000000e+00> : vector<16x128xf32>
    %6 = tpu.matmul %4, %5, %cst {dimension_numbers = #tpu.dot_dimension_numbers<[1], [0], [0], [1], [0, 0, 1, 1], [], []>} : vector<16x32xbf16>, vector<32x128xbf16>, vector<16x128xf32> -> vector<16x128xf32>
    %c0_4 = arith.constant 0 : index
    %c0_5 = arith.constant 0 : index
    %7 = vector.load %arg4[%c0_4, %c0_5] : memref<1x128xf32, #tpu.memory_space<vmem>>, vector<1x128xf32>
    %8 = vector.broadcast %7 : vector<1x128xf32> to vector<16x128xf32>
    %9 = arith.addf %6, %8 : vector<16x128xf32>
    %c0_6 = arith.constant 0 : index
    %c0_7 = arith.constant 0 : index
    %10 = vector.load %arg5[%c0_6, %c0_7] : memref<16x1xf32, #tpu.memory_space<vmem>>, vector<16x1xf32>
    %cst_8 = arith.constant dense<0xFF800000> : vector<16xf32>
    %11 = vector.multi_reduction <maximumf>, %9, %cst_8 [1] : vector<16x128xf32> to vector<16xf32>
    %12 = vector.shape_cast %11 : vector<16xf32> to vector<16x1xf32>
    %13 = arith.maximumf %10, %12 : vector<16x1xf32>
    %c0_9 = arith.constant 0 : index
    %c0_10 = arith.constant 0 : index
    %14 = vector.load %arg6[%c0_9, %c0_10] : memref<16x1xf32, #tpu.memory_space<vmem>>, vector<16x1xf32>
    %15 = arith.subf %10, %13 : vector<16x1xf32>
    %16 = math.exp %15 : vector<16x1xf32>
    %17 = arith.mulf %14, %16 : vector<16x1xf32>
    %18 = vector.broadcast %13 : vector<16x1xf32> to vector<16x128xf32>
    %19 = arith.subf %9, %18 : vector<16x128xf32>
    %20 = math.exp %19 : vector<16x128xf32>
    %cst_11 = arith.constant dense<0.000000e+00> : vector<16xf32>
    %21 = vector.multi_reduction <add>, %20, %cst_11 [1] : vector<16x128xf32> to vector<16xf32>
    %22 = vector.shape_cast %21 : vector<16xf32> to vector<16x1xf32>
    %23 = arith.addf %17, %22 : vector<16x1xf32>
    %c0_12 = arith.constant 0 : index
    %c0_13 = arith.constant 0 : index
    %24 = vector.load %arg6[%c0_12, %c0_13] : memref<16x1xf32, #tpu.memory_space<vmem>>, vector<16x1xf32>
    tpu.vector_store %arg6[%c0_12, %c0_13], %23 {strides = array<i32>} : memref<16x1xf32, #tpu.memory_space<vmem>>, vector<16x1xf32>,
    %c0_14 = arith.constant 0 : index
    %c0_15 = arith.constant 0 : index
    %25 = vector.load %arg5[%c0_14, %c0_15] : memref<16x1xf32, #tpu.memory_space<vmem>>, vector<16x1xf32>
    tpu.vector_store %arg5[%c0_14, %c0_15], %13 {strides = array<i32>} : memref<16x1xf32, #tpu.memory_space<vmem>>, vector<16x1xf32>,
    return
  }
  func.func @transform_0(%arg0: i32, %arg1: i32) -> (i32, i32) {
    %c0_i32 = arith.constant 0 : i32
    %c0_i32_0 = arith.constant 0 : i32
    return %arg0, %c0_i32 : i32, i32
  }
  func.func @transform_1(%arg0: i32, %arg1: i32) -> (i32, i32) {
    %c0_i32 = arith.constant 0 : i32
    %c0_i32_0 = arith.constant 0 : i32
    return %c0_i32, %arg1 : i32, i32
  }
  func.func @transform_2(%arg0: i32, %arg1: i32) -> (i32, i32) {
    %c0_i32 = arith.constant 0 : i32
    %c0_i32_0 = arith.constant 0 : i32
    return %c0_i32, %arg1 : i32, i32
  }
  func.func @transform_3(%arg0: i32, %arg1: i32) -> (i32, i32) {
    %c0_i32 = arith.constant 0 : i32
    %c0_i32_0 = arith.constant 0 : i32
    return %arg0, %c0_i32 : i32, i32
  }
  func.func @transform_4(%arg0: i32, %arg1: i32) -> (i32, i32) {
    %c0_i32 = arith.constant 0 : i32
    %c0_i32_0 = arith.constant 0 : i32
    return %arg0, %c0_i32 : i32, i32
  }
}

module attributes {stable_mosaic.version = 11 : i64} {
  func.func @head_probs_kernel(%arg0: i32, %arg1: i32, %arg2: memref<16x32xf32, #tpu.memory_space<vmem>>, %arg3: memref<32x128xbf16, #tpu.memory_space<vmem>>, %arg4: memref<1x128xf32, #tpu.memory_space<vmem>>, %arg5: memref<16x1xf32, #tpu.memory_space<vmem>>, %arg6: memref<16x1xf32, #tpu.memory_space<vmem>>, %arg7: memref<16x128xf32, #tpu.memory_space<vmem>>) attributes {dimension_semantics = [#tpu.dimension_semantics<parallel>, #tpu.dimension_semantics<parallel>], iteration_bounds = array<i64: 1, 1>, scalar_prefetch = 0 : i64, scratch_operands = 0 : i64, tpu.core_type = #tpu.core_type<tc>, window_params = [{transform_indices = @transform_0, window_bounds = array<i64: 16, 32>}, {transform_indices = @transform_1, window_bounds = array<i64: 32, 128>}, {transform_indices = @transform_2, window_bounds = array<i64: 1, 128>}, {transform_indices = @transform_3, window_bounds = array<i64: 16, 1>}, {transform_indices = @transform_4, window_bounds = array<i64: 16, 1>}, {transform_indices = @transform_5, window_bounds = array<i64: 16, 128>}]} {
    %c0 = arith.constant 0 : index
    %c0_0 = arith.constant 0 : index
    %0 = vector.load %arg2[%c0, %c0_0] : memref<16x32xf32, #tpu.memory_space<vmem>>, vector<16x32xf32>
    %1 = arith.truncf %0 : vector<16x32xf32> to vector<16x32xbf16>
    %c0_1 = arith.constant 0 : index
    %c0_2 = arith.constant 0 : index
    %2 = vector.load %arg3[%c0_1, %c0_2] : memref<32x128xbf16, #tpu.memory_space<vmem>>, vector<32x128xbf16>
    %cst = arith.constant dense<0.000000e+00> : vector<16x128xf32>
    %3 = tpu.matmul %1, %2, %cst {dimension_numbers = #tpu.dot_dimension_numbers<[1], [0], [0], [1], [0, 0, 1, 1], [], []>} : vector<16x32xbf16>, vector<32x128xbf16>, vector<16x128xf32> -> vector<16x128xf32>
    %c0_3 = arith.constant 0 : index
    %c0_4 = arith.constant 0 : index
    %4 = vector.load %arg4[%c0_3, %c0_4] : memref<1x128xf32, #tpu.memory_space<vmem>>, vector<1x128xf32>
    %5 = vector.broadcast %4 : vector<1x128xf32> to vector<16x128xf32>
    %6 = arith.addf %3, %5 : vector<16x128xf32>
    %c0_5 = arith.constant 0 : index
    %c0_6 = arith.constant 0 : index
    %7 = vector.load %arg5[%c0_5, %c0_6] : memref<16x1xf32, #tpu.memory_space<vmem>>, vector<16x1xf32>
    %8 = vector.broadcast %7 : vector<16x1xf32> to vector<16x128xf32>
    %9 = arith.subf %6, %8 : vector<16x128xf32>
    %10 = math.exp %9 : vector<16x128xf32>
    %c0_7 = arith.constant 0 : index
    %c0_8 = arith.constant 0 : index
    %11 = vector.load %arg6[%c0_7, %c0_8] : memref<16x1xf32, #tpu.memory_space<vmem>>, vector<16x1xf32>
    %12 = tpu.reciprocal %11 {approx = true} : vector<16x1xf32> -> vector<16x1xf32>
    %13 = vector.broadcast %12 : vector<16x1xf32> to vector<16x128xf32>
    %14 = arith.mulf %10, %13 : vector<16x128xf32>
    %c0_9 = arith.constant 0 : index
    %c0_10 = arith.constant 0 : index
    %15 = vector.load %arg7[%c0_9, %c0_10] : memref<16x128xf32, #tpu.memory_space<vmem>>, vector<16x128xf32>
    tpu.vector_store %arg7[%c0_9, %c0_10], %14 {strides = array<i32>} : memref<16x128xf32, #tpu.memory_space<vmem>>, vector<16x128xf32>,
    return
  }
  func.func @transform_0(%arg0: i32, %arg1: i32) -> (i32, i32) {
    %c0_i32 = arith.constant 0 : i32
    %c0_i32_0 = arith.constant 0 : i32
    return %arg0, %c0_i32 : i32, i32
  }
  func.func @transform_1(%arg0: i32, %arg1: i32) -> (i32, i32) {
    %c0_i32 = arith.constant 0 : i32
    %c0_i32_0 = arith.constant 0 : i32
    return %c0_i32, %arg1 : i32, i32
  }
  func.func @transform_2(%arg0: i32, %arg1: i32) -> (i32, i32) {
    %c0_i32 = arith.constant 0 : i32
    %c0_i32_0 = arith.constant 0 : i32
    return %c0_i32, %arg1 : i32, i32
  }
  func.func @transform_3(%arg0: i32, %arg1: i32) -> (i32, i32) {
    %c0_i32 = arith.constant 0 : i32
    %c0_i32_0 = arith.constant 0 : i32
    return %arg0, %c0_i32 : i32, i32
  }
  func.func @transform_4(%arg0: i32, %arg1: i32) -> (i32, i32) {
    %c0_i32 = arith.constant 0 : i32
    %c0_i32_0 = arith.constant 0 : i32
    return %arg0, %c0_i32 : i32, i32
  }
  func.func @transform_5(%arg0: i32, %arg1: i32) -> (i32, i32) {
    %c0_i32 = arith.constant 0 : i32
    return %arg0, %arg1 : i32, i32
  }
}

module attributes {stable_mosaic.version = 11 : i64} {
  func.func @decoder_stack_kernel(%arg0: i32, %arg1: i32, %arg2: memref<16x32xf32, #tpu.memory_space<vmem>>, %arg3: memref<1x1x32xf32, #tpu.memory_space<vmem>>, %arg4: memref<1x1x32xf32, #tpu.memory_space<vmem>>, %arg5: memref<1x32x96xbf16, #tpu.memory_space<vmem>>, %arg6: memref<1x1x96xf32, #tpu.memory_space<vmem>>, %arg7: memref<1x32x32xbf16, #tpu.memory_space<vmem>>, %arg8: memref<1x1x32xf32, #tpu.memory_space<vmem>>, %arg9: memref<1x1x32xf32, #tpu.memory_space<vmem>>, %arg10: memref<1x1x32xf32, #tpu.memory_space<vmem>>, %arg11: memref<1x32x64xbf16, #tpu.memory_space<vmem>>, %arg12: memref<1x1x64xf32, #tpu.memory_space<vmem>>, %arg13: memref<1x64x32xbf16, #tpu.memory_space<vmem>>, %arg14: memref<1x1x32xf32, #tpu.memory_space<vmem>>, %arg15: memref<16x32xf32, #tpu.memory_space<vmem>>, %arg16: memref<16x32xf32, #tpu.memory_space<vmem>>) attributes {dimension_semantics = [#tpu.dimension_semantics<parallel>, #tpu.dimension_semantics<arbitrary>], iteration_bounds = array<i64: 1, 2>, scalar_prefetch = 0 : i64, scratch_operands = 1 : i64, tpu.core_type = #tpu.core_type<tc>, window_params = [{transform_indices = @transform_0, window_bounds = array<i64: 16, 32>}, {transform_indices = @transform_1, window_bounds = array<i64: 1, 1, 32>}, {transform_indices = @transform_2, window_bounds = array<i64: 1, 1, 32>}, {transform_indices = @transform_3, window_bounds = array<i64: 1, 32, 96>}, {transform_indices = @transform_4, window_bounds = array<i64: 1, 1, 96>}, {transform_indices = @transform_5, window_bounds = array<i64: 1, 32, 32>}, {transform_indices = @transform_6, window_bounds = array<i64: 1, 1, 32>}, {transform_indices = @transform_7, window_bounds = array<i64: 1, 1, 32>}, {transform_indices = @transform_8, window_bounds = array<i64: 1, 1, 32>}, {transform_indices = @transform_9, window_bounds = array<i64: 1, 32, 64>}, {transform_indices = @transform_10, window_bounds = array<i64: 1, 1, 64>}, {transform_indices = @transform_11, window_bounds = array<i64: 1, 64, 32>}, {transform_indices = @transform_12, window_bounds = array<i64: 1, 1, 32>}, {transform_indices = @transform_13, window_bounds = array<i64: 16, 32>}]} {
    %c0_i32 = arith.constant 0 : i32
    %0 = arith.cmpi eq, %arg1, %c0_i32 : i32
    %1 = arith.extui %0 : i1 to i32
    %c0_i32_0 = arith.constant 0 : i32
    %2 = arith.cmpi ne, %1, %c0_i32_0 : i32
    scf.if %2 {
      %c0_82 = arith.constant 0 : index
      %c0_83 = arith.constant 0 : index
      %216 = vector.load %arg2[%c0_82, %c0_83] : memref<16x32xf32, #tpu.memory_space<vmem>>, vector<16x32xf32>
      %c0_84 = arith.constant 0 : index
      %c0_85 = arith.constant 0 : index
      %217 = vector.load %arg16[%c0_84, %c0_85] : memref<16x32xf32, #tpu.memory_space<vmem>>, vector<16x32xf32>
      tpu.vector_store %arg16[%c0_84, %c0_85], %216 {strides = array<i32>} : memref<16x32xf32, #tpu.memory_space<vmem>>, vector<16x32xf32>,
    } else {
    }
    %c0 = arith.constant 0 : index
    %c0_1 = arith.constant 0 : index
    %3 = vector.load %arg16[%c0, %c0_1] : memref<16x32xf32, #tpu.memory_space<vmem>>, vector<16x32xf32>
    %c0_2 = arith.constant 0 : index
    %c0_3 = arith.constant 0 : index
    %c0_4 = arith.constant 0 : index
    %4 = vector.load %arg3[%c0_2, %c0_3, %c0_4] : memref<1x1x32xf32, #tpu.memory_space<vmem>>, vector<1x1x32xf32>
    %5 = vector.shape_cast %4 : vector<1x1x32xf32> to vector<1x32xf32>
    %c0_5 = arith.constant 0 : index
    %c0_6 = arith.constant 0 : index
    %c0_7 = arith.constant 0 : index
    %6 = vector.load %arg4[%c0_5, %c0_6, %c0_7] : memref<1x1x32xf32, #tpu.memory_space<vmem>>, vector<1x1x32xf32>
    %7 = vector.shape_cast %6 : vector<1x1x32xf32> to vector<1x32xf32>
    %cst = arith.constant dense<0.000000e+00> : vector<16xf32>
    %8 = vector.multi_reduction <add>, %3, %cst [1] : vector<16x32xf32> to vector<16xf32>
    %9 = vector.shape_cast %8 : vector<16xf32> to vector<16x1xf32>
    %cst_8 = arith.constant 3.200000e+01 : f32
    %10 = vector.broadcast %cst_8 : f32 to vector<16x1xf32>
    %11 = arith.divf %9, %10 : vector<16x1xf32>
    %12 = vector.broadcast %11 : vector<16x1xf32> to vector<16x32xf32>
    %13 = arith.subf %3, %12 : vector<16x32xf32>
    %14 = arith.mulf %13, %13 : vector<16x32xf32>
    %cst_9 = arith.constant dense<0.000000e+00> : vector<16xf32>
    %15 = vector.multi_reduction <add>, %14, %cst_9 [1] : vector<16x32xf32> to vector<16xf32>
    %16 = vector.shape_cast %15 : vector<16xf32> to vector<16x1xf32>
    %cst_10 = arith.constant 3.200000e+01 : f32
    %17 = vector.broadcast %cst_10 : f32 to vector<16x1xf32>
    %18 = arith.divf %16, %17 : vector<16x1xf32>
    %19 = vector.broadcast %11 : vector<16x1xf32> to vector<16x32xf32>
    %20 = arith.subf %3, %19 : vector<16x32xf32>
    %cst_11 = arith.constant 9.99999974E-6 : f32
    %21 = vector.broadcast %cst_11 : f32 to vector<16x1xf32>
    %22 = arith.addf %18, %21 : vector<16x1xf32>
    %23 = math.rsqrt %22 : vector<16x1xf32>
    %24 = vector.broadcast %23 : vector<16x1xf32> to vector<16x32xf32>
    %25 = arith.mulf %20, %24 : vector<16x32xf32>
    %26 = vector.broadcast %5 : vector<1x32xf32> to vector<16x32xf32>
    %27 = arith.mulf %25, %26 : vector<16x32xf32>
    %28 = vector.broadcast %7 : vector<1x32xf32> to vector<16x32xf32>
    %29 = arith.addf %27, %28 : vector<16x32xf32>
    %30 = arith.truncf %29 : vector<16x32xf32> to vector<16x32xbf16>
    %c0_12 = arith.constant 0 : index
    %c0_13 = arith.constant 0 : index
    %c0_14 = arith.constant 0 : index
    %31 = vector.load %arg5[%c0_12, %c0_13, %c0_14] : memref<1x32x96xbf16, #tpu.memory_space<vmem>>, vector<1x32x96xbf16>
    %32 = vector.shape_cast %31 : vector<1x32x96xbf16> to vector<32x96xbf16>
    %cst_15 = arith.constant dense<0.000000e+00> : vector<16x96xf32>
    %33 = tpu.matmul %30, %32, %cst_15 {dimension_numbers = #tpu.dot_dimension_numbers<[1], [0], [0], [1], [0, 0, 1, 1], [], []>} : vector<16x32xbf16>, vector<32x96xbf16>, vector<16x96xf32> -> vector<16x96xf32>
    %c0_16 = arith.constant 0 : index
    %c0_17 = arith.constant 0 : index
    %c0_18 = arith.constant 0 : index
    %34 = vector.load %arg6[%c0_16, %c0_17, %c0_18] : memref<1x1x96xf32, #tpu.memory_space<vmem>>, vector<1x1x96xf32>
    %35 = vector.shape_cast %34 : vector<1x1x96xf32> to vector<1x96xf32>
    %36 = vector.broadcast %35 : vector<1x96xf32> to vector<16x96xf32>
    %37 = arith.addf %33, %36 : vector<16x96xf32>
    %38 = arith.truncf %37 : vector<16x96xf32> to vector<16x96xbf16>
    %39 = tpu.iota {dimensions = array<i32: 0>} : vector<8x8xi32>
    %40 = tpu.iota {dimensions = array<i32: 1>} : vector<8x8xi32>
    %41 = arith.cmpi sle, %40, %39 : vector<8x8xi32>
    %42 = vector.extract_strided_slice %38 {offsets = [0, 0], sizes = [16, 8], strides = [1, 1]} : vector<16x96xbf16> to vector<16x8xbf16>
    %43 = vector.shape_cast %42 : vector<16x8xbf16> to vector<2x8x8xbf16>
    %44 = vector.extract_strided_slice %38 {offsets = [0, 32], sizes = [16, 8], strides = [1, 1]} : vector<16x96xbf16> to vector<16x8xbf16>
    %45 = vector.shape_cast %44 : vector<16x8xbf16> to vector<2x8x8xbf16>
    %46 = vector.extract_strided_slice %38 {offsets = [0, 64], sizes = [16, 8], strides = [1, 1]} : vector<16x96xbf16> to vector<16x8xbf16>
    %47 = vector.shape_cast %46 : vector<16x8xbf16> to vector<2x8x8xbf16>
    "tpu.trace_start"() <{level = 10 : i32, message = "bqd,bkd->bqk"}> : () -> ()
    %cst_19 = arith.constant dense<0.000000e+00> : vector<2x8x8xf32>
    %48 = tpu.matmul %43, %45, %cst_19 {dimension_numbers = #tpu.dot_dimension_numbers<[2], [2], [1], [1], [0, 0, 0, 1, 1, 1], [0], [0]>} : vector<2x8x8xbf16>, vector<2x8x8xbf16>, vector<2x8x8xf32> -> vector<2x8x8xf32>
    "tpu.trace_stop"() : () -> ()
    %cst_20 = arith.constant 0.353553385 : f32
    %49 = vector.broadcast %cst_20 : f32 to vector<2x8x8xf32>
    %50 = arith.mulf %48, %49 : vector<2x8x8xf32>
    %cst_21 = arith.constant -1.000000e+30 : f32
    %51 = vector.shape_cast %41 : vector<8x8xi1> to vector<1x8x8xi1>
    %52 = vector.broadcast %51 : vector<1x8x8xi1> to vector<2x8x8xi1>
    %53 = vector.broadcast %cst_21 : f32 to vector<2x8x8xf32>
    %54 = arith.select %52, %50, %53 : vector<2x8x8xi1>, vector<2x8x8xf32>
    %cst_22 = arith.constant dense<0xFF800000> : vector<2x8xf32>
    %55 = vector.multi_reduction <maximumf>, %54, %cst_22 [2] : vector<2x8x8xf32> to vector<2x8xf32>
    %56 = vector.shape_cast %55 : vector<2x8xf32> to vector<2x8x1xf32>
    %57 = vector.broadcast %56 : vector<2x8x1xf32> to vector<2x8x8xf32>
    %58 = arith.subf %54, %57 : vector<2x8x8xf32>
    %59 = math.exp %58 : vector<2x8x8xf32>
    %cst_23 = arith.constant dense<0.000000e+00> : vector<2x8xf32>
    %60 = vector.multi_reduction <add>, %59, %cst_23 [2] : vector<2x8x8xf32> to vector<2x8xf32>
    %61 = vector.shape_cast %60 : vector<2x8xf32> to vector<2x8x1xf32>
    %62 = tpu.reciprocal %61 {approx = true} : vector<2x8x1xf32> -> vector<2x8x1xf32>
    %63 = vector.broadcast %62 : vector<2x8x1xf32> to vector<2x8x8xf32>
    %64 = arith.mulf %59, %63 : vector<2x8x8xf32>
    %65 = arith.truncf %64 : vector<2x8x8xf32> to vector<2x8x8xbf16>
    "tpu.trace_start"() <{level = 10 : i32, message = "bqk,bkd->bqd"}> : () -> ()
    %cst_24 = arith.constant dense<0.000000e+00> : vector<2x8x8xf32>
    %66 = tpu.matmul %65, %47, %cst_24 {dimension_numbers = #tpu.dot_dimension_numbers<[2], [1], [1], [2], [0, 0, 0, 1, 1, 2], [0], [0]>} : vector<2x8x8xbf16>, vector<2x8x8xbf16>, vector<2x8x8xf32> -> vector<2x8x8xf32>
    "tpu.trace_stop"() : () -> ()
    %67 = vector.shape_cast %66 : vector<2x8x8xf32> to vector<16x8xf32>
    %68 = vector.extract_strided_slice %38 {offsets = [0, 8], sizes = [16, 8], strides = [1, 1]} : vector<16x96xbf16> to vector<16x8xbf16>
    %69 = vector.shape_cast %68 : vector<16x8xbf16> to vector<2x8x8xbf16>
    %70 = vector.extract_strided_slice %38 {offsets = [0, 40], sizes = [16, 8], strides = [1, 1]} : vector<16x96xbf16> to vector<16x8xbf16>
    %71 = vector.shape_cast %70 : vector<16x8xbf16> to vector<2x8x8xbf16>
    %72 = vector.extract_strided_slice %38 {offsets = [0, 72], sizes = [16, 8], strides = [1, 1]} : vector<16x96xbf16> to vector<16x8xbf16>
    %73 = vector.shape_cast %72 : vector<16x8xbf16> to vector<2x8x8xbf16>
    "tpu.trace_start"() <{level = 10 : i32, message = "bqd,bkd->bqk"}> : () -> ()
    %cst_25 = arith.constant dense<0.000000e+00> : vector<2x8x8xf32>
    %74 = tpu.matmul %69, %71, %cst_25 {dimension_numbers = #tpu.dot_dimension_numbers<[2], [2], [1], [1], [0, 0, 0, 1, 1, 1], [0], [0]>} : vector<2x8x8xbf16>, vector<2x8x8xbf16>, vector<2x8x8xf32> -> vector<2x8x8xf32>
    "tpu.trace_stop"() : () -> ()
    %cst_26 = arith.constant 0.353553385 : f32
    %75 = vector.broadcast %cst_26 : f32 to vector<2x8x8xf32>
    %76 = arith.mulf %74, %75 : vector<2x8x8xf32>
    %cst_27 = arith.constant -1.000000e+30 : f32
    %77 = vector.shape_cast %41 : vector<8x8xi1> to vector<1x8x8xi1>
    %78 = vector.broadcast %77 : vector<1x8x8xi1> to vector<2x8x8xi1>
    %79 = vector.broadcast %cst_27 : f32 to vector<2x8x8xf32>
    %80 = arith.select %78, %76, %79 : vector<2x8x8xi1>, vector<2x8x8xf32>
    %cst_28 = arith.constant dense<0xFF800000> : vector<2x8xf32>
    %81 = vector.multi_reduction <maximumf>, %80, %cst_28 [2] : vector<2x8x8xf32> to vector<2x8xf32>
    %82 = vector.shape_cast %81 : vector<2x8xf32> to vector<2x8x1xf32>
    %83 = vector.broadcast %82 : vector<2x8x1xf32> to vector<2x8x8xf32>
    %84 = arith.subf %80, %83 : vector<2x8x8xf32>
    %85 = math.exp %84 : vector<2x8x8xf32>
    %cst_29 = arith.constant dense<0.000000e+00> : vector<2x8xf32>
    %86 = vector.multi_reduction <add>, %85, %cst_29 [2] : vector<2x8x8xf32> to vector<2x8xf32>
    %87 = vector.shape_cast %86 : vector<2x8xf32> to vector<2x8x1xf32>
    %88 = tpu.reciprocal %87 {approx = true} : vector<2x8x1xf32> -> vector<2x8x1xf32>
    %89 = vector.broadcast %88 : vector<2x8x1xf32> to vector<2x8x8xf32>
    %90 = arith.mulf %85, %89 : vector<2x8x8xf32>
    %91 = arith.truncf %90 : vector<2x8x8xf32> to vector<2x8x8xbf16>
    "tpu.trace_start"() <{level = 10 : i32, message = "bqk,bkd->bqd"}> : () -> ()
    %cst_30 = arith.constant dense<0.000000e+00> : vector<2x8x8xf32>
    %92 = tpu.matmul %91, %73, %cst_30 {dimension_numbers = #tpu.dot_dimension_numbers<[2], [1], [1], [2], [0, 0, 0, 1, 1, 2], [0], [0]>} : vector<2x8x8xbf16>, vector<2x8x8xbf16>, vector<2x8x8xf32> -> vector<2x8x8xf32>
    "tpu.trace_stop"() : () -> ()
    %93 = vector.shape_cast %92 : vector<2x8x8xf32> to vector<16x8xf32>
    %94 = vector.extract_strided_slice %38 {offsets = [0, 16], sizes = [16, 8], strides = [1, 1]} : vector<16x96xbf16> to vector<16x8xbf16>
    %95 = vector.shape_cast %94 : vector<16x8xbf16> to vector<2x8x8xbf16>
    %96 = vector.extract_strided_slice %38 {offsets = [0, 48], sizes = [16, 8], strides = [1, 1]} : vector<16x96xbf16> to vector<16x8xbf16>
    %97 = vector.shape_cast %96 : vector<16x8xbf16> to vector<2x8x8xbf16>
    %98 = vector.extract_strided_slice %38 {offsets = [0, 80], sizes = [16, 8], strides = [1, 1]} : vector<16x96xbf16> to vector<16x8xbf16>
    %99 = vector.shape_cast %98 : vector<16x8xbf16> to vector<2x8x8xbf16>
    "tpu.trace_start"() <{level = 10 : i32, message = "bqd,bkd->bqk"}> : () -> ()
    %cst_31 = arith.constant dense<0.000000e+00> : vector<2x8x8xf32>
    %100 = tpu.matmul %95, %97, %cst_31 {dimension_numbers = #tpu.dot_dimension_numbers<[2], [2], [1], [1], [0, 0, 0, 1, 1, 1], [0], [0]>} : vector<2x8x8xbf16>, vector<2x8x8xbf16>, vector<2x8x8xf32> -> vector<2x8x8xf32>
    "tpu.trace_stop"() : () -> ()
    %cst_32 = arith.constant 0.353553385 : f32
    %101 = vector.broadcast %cst_32 : f32 to vector<2x8x8xf32>
    %102 = arith.mulf %100, %101 : vector<2x8x8xf32>
    %cst_33 = arith.constant -1.000000e+30 : f32
    %103 = vector.shape_cast %41 : vector<8x8xi1> to vector<1x8x8xi1>
    %104 = vector.broadcast %103 : vector<1x8x8xi1> to vector<2x8x8xi1>
    %105 = vector.broadcast %cst_33 : f32 to vector<2x8x8xf32>
    %106 = arith.select %104, %102, %105 : vector<2x8x8xi1>, vector<2x8x8xf32>
    %cst_34 = arith.constant dense<0xFF800000> : vector<2x8xf32>
    %107 = vector.multi_reduction <maximumf>, %106, %cst_34 [2] : vector<2x8x8xf32> to vector<2x8xf32>
    %108 = vector.shape_cast %107 : vector<2x8xf32> to vector<2x8x1xf32>
    %109 = vector.broadcast %108 : vector<2x8x1xf32> to vector<2x8x8xf32>
    %110 = arith.subf %106, %109 : vector<2x8x8xf32>
    %111 = math.exp %110 : vector<2x8x8xf32>
    %cst_35 = arith.constant dense<0.000000e+00> : vector<2x8xf32>
    %112 = vector.multi_reduction <add>, %111, %cst_35 [2] : vector<2x8x8xf32> to vector<2x8xf32>
    %113 = vector.shape_cast %112 : vector<2x8xf32> to vector<2x8x1xf32>
    %114 = tpu.reciprocal %113 {approx = true} : vector<2x8x1xf32> -> vector<2x8x1xf32>
    %115 = vector.broadcast %114 : vector<2x8x1xf32> to vector<2x8x8xf32>
    %116 = arith.mulf %111, %115 : vector<2x8x8xf32>
    %117 = arith.truncf %116 : vector<2x8x8xf32> to vector<2x8x8xbf16>
    "tpu.trace_start"() <{level = 10 : i32, message = "bqk,bkd->bqd"}> : () -> ()
    %cst_36 = arith.constant dense<0.000000e+00> : vector<2x8x8xf32>
    %118 = tpu.matmul %117, %99, %cst_36 {dimension_numbers = #tpu.dot_dimension_numbers<[2], [1], [1], [2], [0, 0, 0, 1, 1, 2], [0], [0]>} : vector<2x8x8xbf16>, vector<2x8x8xbf16>, vector<2x8x8xf32> -> vector<2x8x8xf32>
    "tpu.trace_stop"() : () -> ()
    %119 = vector.shape_cast %118 : vector<2x8x8xf32> to vector<16x8xf32>
    %120 = vector.extract_strided_slice %38 {offsets = [0, 24], sizes = [16, 8], strides = [1, 1]} : vector<16x96xbf16> to vector<16x8xbf16>
    %121 = vector.shape_cast %120 : vector<16x8xbf16> to vector<2x8x8xbf16>
    %122 = vector.extract_strided_slice %38 {offsets = [0, 56], sizes = [16, 8], strides = [1, 1]} : vector<16x96xbf16> to vector<16x8xbf16>
    %123 = vector.shape_cast %122 : vector<16x8xbf16> to vector<2x8x8xbf16>
    %124 = vector.extract_strided_slice %38 {offsets = [0, 88], sizes = [16, 8], strides = [1, 1]} : vector<16x96xbf16> to vector<16x8xbf16>
    %125 = vector.shape_cast %124 : vector<16x8xbf16> to vector<2x8x8xbf16>
    "tpu.trace_start"() <{level = 10 : i32, message = "bqd,bkd->bqk"}> : () -> ()
    %cst_37 = arith.constant dense<0.000000e+00> : vector<2x8x8xf32>
    %126 = tpu.matmul %121, %123, %cst_37 {dimension_numbers = #tpu.dot_dimension_numbers<[2], [2], [1], [1], [0, 0, 0, 1, 1, 1], [0], [0]>} : vector<2x8x8xbf16>, vector<2x8x8xbf16>, vector<2x8x8xf32> -> vector<2x8x8xf32>
    "tpu.trace_stop"() : () -> ()
    %cst_38 = arith.constant 0.353553385 : f32
    %127 = vector.broadcast %cst_38 : f32 to vector<2x8x8xf32>
    %128 = arith.mulf %126, %127 : vector<2x8x8xf32>
    %cst_39 = arith.constant -1.000000e+30 : f32
    %129 = vector.shape_cast %41 : vector<8x8xi1> to vector<1x8x8xi1>
    %130 = vector.broadcast %129 : vector<1x8x8xi1> to vector<2x8x8xi1>
    %131 = vector.broadcast %cst_39 : f32 to vector<2x8x8xf32>
    %132 = arith.select %130, %128, %131 : vector<2x8x8xi1>, vector<2x8x8xf32>
    %cst_40 = arith.constant dense<0xFF800000> : vector<2x8xf32>
    %133 = vector.multi_reduction <maximumf>, %132, %cst_40 [2] : vector<2x8x8xf32> to vector<2x8xf32>
    %134 = vector.shape_cast %133 : vector<2x8xf32> to vector<2x8x1xf32>
    %135 = vector.broadcast %134 : vector<2x8x1xf32> to vector<2x8x8xf32>
    %136 = arith.subf %132, %135 : vector<2x8x8xf32>
    %137 = math.exp %136 : vector<2x8x8xf32>
    %cst_41 = arith.constant dense<0.000000e+00> : vector<2x8xf32>
    %138 = vector.multi_reduction <add>, %137, %cst_41 [2] : vector<2x8x8xf32> to vector<2x8xf32>
    %139 = vector.shape_cast %138 : vector<2x8xf32> to vector<2x8x1xf32>
    %140 = tpu.reciprocal %139 {approx = true} : vector<2x8x1xf32> -> vector<2x8x1xf32>
    %141 = vector.broadcast %140 : vector<2x8x1xf32> to vector<2x8x8xf32>
    %142 = arith.mulf %137, %141 : vector<2x8x8xf32>
    %143 = arith.truncf %142 : vector<2x8x8xf32> to vector<2x8x8xbf16>
    "tpu.trace_start"() <{level = 10 : i32, message = "bqk,bkd->bqd"}> : () -> ()
    %cst_42 = arith.constant dense<0.000000e+00> : vector<2x8x8xf32>
    %144 = tpu.matmul %143, %125, %cst_42 {dimension_numbers = #tpu.dot_dimension_numbers<[2], [1], [1], [2], [0, 0, 0, 1, 1, 2], [0], [0]>} : vector<2x8x8xbf16>, vector<2x8x8xbf16>, vector<2x8x8xf32> -> vector<2x8x8xf32>
    "tpu.trace_stop"() : () -> ()
    %145 = vector.shape_cast %144 : vector<2x8x8xf32> to vector<16x8xf32>
    %146 = tpu.concatenate %67, %93, %119, %145 in 1 : vector<16x8xf32>, vector<16x8xf32>, vector<16x8xf32>, vector<16x8xf32> -> vector<16x32xf32>
    %147 = arith.truncf %146 : vector<16x32xf32> to vector<16x32xbf16>
    %c0_43 = arith.constant 0 : index
    %c0_44 = arith.constant 0 : index
    %c0_45 = arith.constant 0 : index
    %148 = vector.load %arg7[%c0_43, %c0_44, %c0_45] : memref<1x32x32xbf16, #tpu.memory_space<vmem>>, vector<1x32x32xbf16>
    %149 = vector.shape_cast %148 : vector<1x32x32xbf16> to vector<32x32xbf16>
    %cst_46 = arith.constant dense<0.000000e+00> : vector<16x32xf32>
    %150 = tpu.matmul %147, %149, %cst_46 {dimension_numbers = #tpu.dot_dimension_numbers<[1], [0], [0], [1], [0, 0, 1, 1], [], []>} : vector<16x32xbf16>, vector<32x32xbf16>, vector<16x32xf32> -> vector<16x32xf32>
    %c0_47 = arith.constant 0 : index
    %c0_48 = arith.constant 0 : index
    %c0_49 = arith.constant 0 : index
    %151 = vector.load %arg8[%c0_47, %c0_48, %c0_49] : memref<1x1x32xf32, #tpu.memory_space<vmem>>, vector<1x1x32xf32>
    %152 = vector.shape_cast %151 : vector<1x1x32xf32> to vector<1x32xf32>
    %153 = vector.broadcast %152 : vector<1x32xf32> to vector<16x32xf32>
    %154 = arith.addf %150, %153 : vector<16x32xf32>
    %155 = arith.addf %3, %154 : vector<16x32xf32>
    %c0_50 = arith.constant 0 : index
    %c0_51 = arith.constant 0 : index
    %c0_52 = arith.constant 0 : index
    %156 = vector.load %arg9[%c0_50, %c0_51, %c0_52] : memref<1x1x32xf32, #tpu.memory_space<vmem>>, vector<1x1x32xf32>
    %157 = vector.shape_cast %156 : vector<1x1x32xf32> to vector<1x32xf32>
    %c0_53 = arith.constant 0 : index
    %c0_54 = arith.constant 0 : index
    %c0_55 = arith.constant 0 : index
    %158 = vector.load %arg10[%c0_53, %c0_54, %c0_55] : memref<1x1x32xf32, #tpu.memory_space<vmem>>, vector<1x1x32xf32>
    %159 = vector.shape_cast %158 : vector<1x1x32xf32> to vector<1x32xf32>
    %cst_56 = arith.constant dense<0.000000e+00> : vector<16xf32>
    %160 = vector.multi_reduction <add>, %155, %cst_56 [1] : vector<16x32xf32> to vector<16xf32>
    %161 = vector.shape_cast %160 : vector<16xf32> to vector<16x1xf32>
    %cst_57 = arith.constant 3.200000e+01 : f32
    %162 = vector.broadcast %cst_57 : f32 to vector<16x1xf32>
    %163 = arith.divf %161, %162 : vector<16x1xf32>
    %164 = vector.broadcast %163 : vector<16x1xf32> to vector<16x32xf32>
    %165 = arith.subf %155, %164 : vector<16x32xf32>
    %166 = arith.mulf %165, %165 : vector<16x32xf32>
    %cst_58 = arith.constant dense<0.000000e+00> : vector<16xf32>
    %167 = vector.multi_reduction <add>, %166, %cst_58 [1] : vector<16x32xf32> to vector<16xf32>
    %168 = vector.shape_cast %167 : vector<16xf32> to vector<16x1xf32>
    %cst_59 = arith.constant 3.200000e+01 : f32
    %169 = vector.broadcast %cst_59 : f32 to vector<16x1xf32>
    %170 = arith.divf %168, %169 : vector<16x1xf32>
    %171 = vector.broadcast %163 : vector<16x1xf32> to vector<16x32xf32>
    %172 = arith.subf %155, %171 : vector<16x32xf32>
    %cst_60 = arith.constant 9.99999974E-6 : f32
    %173 = vector.broadcast %cst_60 : f32 to vector<16x1xf32>
    %174 = arith.addf %170, %173 : vector<16x1xf32>
    %175 = math.rsqrt %174 : vector<16x1xf32>
    %176 = vector.broadcast %175 : vector<16x1xf32> to vector<16x32xf32>
    %177 = arith.mulf %172, %176 : vector<16x32xf32>
    %178 = vector.broadcast %157 : vector<1x32xf32> to vector<16x32xf32>
    %179 = arith.mulf %177, %178 : vector<16x32xf32>
    %180 = vector.broadcast %159 : vector<1x32xf32> to vector<16x32xf32>
    %181 = arith.addf %179, %180 : vector<16x32xf32>
    %182 = arith.truncf %181 : vector<16x32xf32> to vector<16x32xbf16>
    %c0_61 = arith.constant 0 : index
    %c0_62 = arith.constant 0 : index
    %c0_63 = arith.constant 0 : index
    %183 = vector.load %arg11[%c0_61, %c0_62, %c0_63] : memref<1x32x64xbf16, #tpu.memory_space<vmem>>, vector<1x32x64xbf16>
    %184 = vector.shape_cast %183 : vector<1x32x64xbf16> to vector<32x64xbf16>
    %cst_64 = arith.constant dense<0.000000e+00> : vector<16x64xf32>
    %185 = tpu.matmul %182, %184, %cst_64 {dimension_numbers = #tpu.dot_dimension_numbers<[1], [0], [0], [1], [0, 0, 1, 1], [], []>} : vector<16x32xbf16>, vector<32x64xbf16>, vector<16x64xf32> -> vector<16x64xf32>
    %c0_65 = arith.constant 0 : index
    %c0_66 = arith.constant 0 : index
    %c0_67 = arith.constant 0 : index
    %186 = vector.load %arg12[%c0_65, %c0_66, %c0_67] : memref<1x1x64xf32, #tpu.memory_space<vmem>>, vector<1x1x64xf32>
    %187 = vector.shape_cast %186 : vector<1x1x64xf32> to vector<1x64xf32>
    %188 = vector.broadcast %187 : vector<1x64xf32> to vector<16x64xf32>
    %189 = arith.addf %185, %188 : vector<16x64xf32>
    %190 = arith.mulf %189, %189 : vector<16x64xf32>
    %191 = arith.mulf %189, %190 : vector<16x64xf32>
    %cst_68 = arith.constant 4.471500e-02 : f32
    %192 = vector.broadcast %cst_68 : f32 to vector<16x64xf32>
    %193 = arith.mulf %192, %191 : vector<16x64xf32>
    %194 = arith.addf %189, %193 : vector<16x64xf32>
    %cst_69 = arith.constant 0.797884583 : f32
    %195 = vector.broadcast %cst_69 : f32 to vector<16x64xf32>
    %196 = arith.mulf %195, %194 : vector<16x64xf32>
    %197 = math.tanh %196 : vector<16x64xf32>
    %cst_70 = arith.constant 1.000000e+00 : f32
    %198 = vector.broadcast %cst_70 : f32 to vector<16x64xf32>
    %199 = arith.addf %198, %197 : vector<16x64xf32>
    %cst_71 = arith.constant 5.000000e-01 : f32
    %200 = vector.broadcast %cst_71 : f32 to vector<16x64xf32>
    %201 = arith.mulf %200, %199 : vector<16x64xf32>
    %202 = arith.mulf %189, %201 : vector<16x64xf32>
    %203 = arith.truncf %202 : vector<16x64xf32> to vector<16x64xbf16>
    %c0_72 = arith.constant 0 : index
    %c0_73 = arith.constant 0 : index
    %c0_74 = arith.constant 0 : index
    %204 = vector.load %arg13[%c0_72, %c0_73, %c0_74] : memref<1x64x32xbf16, #tpu.memory_space<vmem>>, vector<1x64x32xbf16>
    %205 = vector.shape_cast %204 : vector<1x64x32xbf16> to vector<64x32xbf16>
    %cst_75 = arith.constant dense<0.000000e+00> : vector<16x32xf32>
    %206 = tpu.matmul %203, %205, %cst_75 {dimension_numbers = #tpu.dot_dimension_numbers<[1], [0], [0], [1], [0, 0, 1, 1], [], []>} : vector<16x64xbf16>, vector<64x32xbf16>, vector<16x32xf32> -> vector<16x32xf32>
    %c0_76 = arith.constant 0 : index
    %c0_77 = arith.constant 0 : index
    %c0_78 = arith.constant 0 : index
    %207 = vector.load %arg14[%c0_76, %c0_77, %c0_78] : memref<1x1x32xf32, #tpu.memory_space<vmem>>, vector<1x1x32xf32>
    %208 = vector.shape_cast %207 : vector<1x1x32xf32> to vector<1x32xf32>
    %209 = vector.broadcast %208 : vector<1x32xf32> to vector<16x32xf32>
    %210 = arith.addf %206, %209 : vector<16x32xf32>
    %211 = arith.addf %155, %210 : vector<16x32xf32>
    %c0_79 = arith.constant 0 : index
    %c0_80 = arith.constant 0 : index
    %212 = vector.load %arg16[%c0_79, %c0_80] : memref<16x32xf32, #tpu.memory_space<vmem>>, vector<16x32xf32>
    tpu.vector_store %arg16[%c0_79, %c0_80], %211 {strides = array<i32>} : memref<16x32xf32, #tpu.memory_space<vmem>>, vector<16x32xf32>,
    %c1_i32 = arith.constant 1 : i32
    %213 = arith.cmpi eq, %arg1, %c1_i32 : i32
    %214 = arith.extui %213 : i1 to i32
    %c0_i32_81 = arith.constant 0 : i32
    %215 = arith.cmpi ne, %214, %c0_i32_81 : i32
    scf.if %215 {
      %c0_82 = arith.constant 0 : index
      %c0_83 = arith.constant 0 : index
      %216 = vector.load %arg15[%c0_82, %c0_83] : memref<16x32xf32, #tpu.memory_space<vmem>>, vector<16x32xf32>
      tpu.vector_store %arg15[%c0_82, %c0_83], %211 {strides = array<i32>} : memref<16x32xf32, #tpu.memory_space<vmem>>, vector<16x32xf32>,
    } else {
    }
    return
  }
  func.func @transform_0(%arg0: i32, %arg1: i32) -> (i32, i32) {
    %c0_i32 = arith.constant 0 : i32
    %c0_i32_0 = arith.constant 0 : i32
    return %arg0, %c0_i32 : i32, i32
  }
  func.func @transform_1(%arg0: i32, %arg1: i32) -> (i32, i32, i32) {
    %c0_i32 = arith.constant 0 : i32
    %c0_i32_0 = arith.constant 0 : i32
    %c0_i32_1 = arith.constant 0 : i32
    return %arg1, %c0_i32, %c0_i32_0 : i32, i32, i32
  }
  func.func @transform_2(%arg0: i32, %arg1: i32) -> (i32, i32, i32) {
    %c0_i32 = arith.constant 0 : i32
    %c0_i32_0 = arith.constant 0 : i32
    %c0_i32_1 = arith.constant 0 : i32
    return %arg1, %c0_i32, %c0_i32_0 : i32, i32, i32
  }
  func.func @transform_3(%arg0: i32, %arg1: i32) -> (i32, i32, i32) {
    %c0_i32 = arith.constant 0 : i32
    %c0_i32_0 = arith.constant 0 : i32
    %c0_i32_1 = arith.constant 0 : i32
    return %arg1, %c0_i32, %c0_i32_0 : i32, i32, i32
  }
  func.func @transform_4(%arg0: i32, %arg1: i32) -> (i32, i32, i32) {
    %c0_i32 = arith.constant 0 : i32
    %c0_i32_0 = arith.constant 0 : i32
    %c0_i32_1 = arith.constant 0 : i32
    return %arg1, %c0_i32, %c0_i32_0 : i32, i32, i32
  }
  func.func @transform_5(%arg0: i32, %arg1: i32) -> (i32, i32, i32) {
    %c0_i32 = arith.constant 0 : i32
    %c0_i32_0 = arith.constant 0 : i32
    %c0_i32_1 = arith.constant 0 : i32
    return %arg1, %c0_i32, %c0_i32_0 : i32, i32, i32
  }
  func.func @transform_6(%arg0: i32, %arg1: i32) -> (i32, i32, i32) {
    %c0_i32 = arith.constant 0 : i32
    %c0_i32_0 = arith.constant 0 : i32
    %c0_i32_1 = arith.constant 0 : i32
    return %arg1, %c0_i32, %c0_i32_0 : i32, i32, i32
  }
  func.func @transform_7(%arg0: i32, %arg1: i32) -> (i32, i32, i32) {
    %c0_i32 = arith.constant 0 : i32
    %c0_i32_0 = arith.constant 0 : i32
    %c0_i32_1 = arith.constant 0 : i32
    return %arg1, %c0_i32, %c0_i32_0 : i32, i32, i32
  }
  func.func @transform_8(%arg0: i32, %arg1: i32) -> (i32, i32, i32) {
    %c0_i32 = arith.constant 0 : i32
    %c0_i32_0 = arith.constant 0 : i32
    %c0_i32_1 = arith.constant 0 : i32
    return %arg1, %c0_i32, %c0_i32_0 : i32, i32, i32
  }
  func.func @transform_9(%arg0: i32, %arg1: i32) -> (i32, i32, i32) {
    %c0_i32 = arith.constant 0 : i32
    %c0_i32_0 = arith.constant 0 : i32
    %c0_i32_1 = arith.constant 0 : i32
    return %arg1, %c0_i32, %c0_i32_0 : i32, i32, i32
  }
  func.func @transform_10(%arg0: i32, %arg1: i32) -> (i32, i32, i32) {
    %c0_i32 = arith.constant 0 : i32
    %c0_i32_0 = arith.constant 0 : i32
    %c0_i32_1 = arith.constant 0 : i32
    return %arg1, %c0_i32, %c0_i32_0 : i32, i32, i32
  }
  func.func @transform_11(%arg0: i32, %arg1: i32) -> (i32, i32, i32) {
    %c0_i32 = arith.constant 0 : i32
    %c0_i32_0 = arith.constant 0 : i32
    %c0_i32_1 = arith.constant 0 : i32
    return %arg1, %c0_i32, %c0_i32_0 : i32, i32, i32
  }
  func.func @transform_12(%arg0: i32, %arg1: i32) -> (i32, i32, i32) {
    %c0_i32 = arith.constant 0 : i32
    %c0_i32_0 = arith.constant 0 : i32
    %c0_i32_1 = arith.constant 0 : i32
    return %arg1, %c0_i32, %c0_i32_0 : i32, i32, i32
  }
  func.func @transform_13(%arg0: i32, %arg1: i32) -> (i32, i32) {
    %c0_i32 = arith.constant 0 : i32
    %c0_i32_0 = arith.constant 0 : i32
    return %arg0, %c0_i32 : i32, i32
  }
}

</mosaic_0001>

<llo_original>
// kernel: gpt_forward.5
$region0: #{gpt_forward.5}
  #allocation0 [shape = 'u32[]', space=smem, size = 0x4, offset = 0x4, fixed_abs, tag = 'smem constant byte address 0x4 - core index']
  #allocation1 [shape = 'u32[72,128]{1,0:T(1,128)}', space=vmem, size = 0x9000, scoped, tag = 'internal scratch']
  %s0 = inlined_call_operand.vmem [shape: f32[16,32], index: 0, kind: input, shape index: {}]
  %s1 = inlined_call_operand.vmem [shape: bf16[32,128], index: 1, kind: input, shape index: {}]
  %s2 = inlined_call_operand.vmem [shape: f32[1,128], index: 2, kind: input, shape index: {}]
  %s3 = inlined_call_operand.vmem [shape: f32[16,1], index: 3, kind: input, shape index: {}]
  %s4 = inlined_call_operand.vmem [shape: f32[16,1], index: 4, kind: input, shape index: {}]
  %s5 = inlined_call_operand.hbm [shape: f32[16,128], index: 5, kind: output, shape index: {}]
  %s6 = sld [smem:[#allocation0]]
  $region30: #{gpt_forward.5} parent=0
    _
  %s8 = ssub.s32 1, %s6
  %s9 = scalar_select 0, %s8, %s6
  $region1: #{gpt_forward.5} parent=0
    #allocation2 [shape = 'u8[8192]{0}', space=vmem, size = 0x2000, scoped, tag = 'output window, operand 0, single buffered']
    #allocation3 [shape = 's32[1]{0}', space=sflag, size = 0x4, scoped, tag = 'scoped memory for gpt_forward.5']
    %10 = vsyncpa [#allocation3], 0
    // Predicated region
    $region2: #{gpt_forward.5} parent=1 // pred_check
      _
    $region3: #{gpt_forward.5} parent=1 // pred_check_branch
      %12 = sbr.rel (0) target = $region5
    $region4: #{gpt_forward.5} parent=1 // pred_region
      _
    $region5: #{gpt_forward.5} parent=1 // pred_fallthru
      _
    // Predicated region
    $region6: #{gpt_forward.5} parent=1 // pred_check
      _
    $region7: #{gpt_forward.5} parent=1 // pred_check_branch
      %14 = sbr.rel (0) target = $region9
    $region8: #{gpt_forward.5} parent=1 // pred_region
      _
    $region9: #{gpt_forward.5} parent=1 // pred_fallthru
      _
    // Predicated region
    $region10: #{gpt_forward.5} parent=1 // pred_check
      _
    $region11: #{gpt_forward.5} parent=1 // pred_check_branch
      %16 = sbr.rel (0) target = $region13
    $region12: #{gpt_forward.5} parent=1 // pred_region
      _
    $region13: #{gpt_forward.5} parent=1 // pred_fallthru
      _
    // Predicated region
    $region14: #{gpt_forward.5} parent=1 // pred_check
      _
    $region15: #{gpt_forward.5} parent=1 // pred_check_branch
      %18 = sbr.rel (0) target = $region17
    $region16: #{gpt_forward.5} parent=1 // pred_region
      _
    $region17: #{gpt_forward.5} parent=1 // pred_fallthru
      _
    // Predicated region
    $region18: #{gpt_forward.5} parent=1 // pred_check
      _
    $region19: #{gpt_forward.5} parent=1 // pred_check_branch
      %20 = sbr.rel (0) target = $region21
    $region20: #{gpt_forward.5} parent=1 // pred_region
      _
    $region21: #{gpt_forward.5} parent=1 // pred_fallthru
      _
    %v22 = vld [vmem:[%s0] sm:$0xff]
    %v23 = vld [vmem:[%s0 + $0x8] sm:$0xff]
    %v24 = vpack.c.bf16 %v23, %v22
    %v25 = vld [vmem:[%s1] sm:$0xf]
    %v26 = vld [vmem:[%s1 + $0x4] sm:$0xf]
    %v27 = vld [vmem:[%s1 + $0x8] sm:$0xf]
    %v28 = vld [vmem:[%s1 + $0xc] sm:$0xf]
    %v29 = vld [vmem:[%s2] sm:$0x1]
    %v31 = vperm.slane %v29, 0
    %v37 = vunpack.c.l.b16 %v25
    %v38 = vunpack.c.l.b16 %v26
    %v39 = vunpack.c.l.b16 %v27
    %v40 = vunpack.c.l.b16 %v28
    %v41 = vpack.c.b16 %v38, %v37
    %v42 = vpack.c.b16 %v40, %v39
    %vm45 = vcmask 261120
    %v47 = vsel %vm45, %v24, 0
    %49 = vmatpush.bf16.msra.mxu0 0
    %50 = vmatpush.bf16.msra.mxu0 0
    %51 = vmatpush.bf16.msra.mxu0 0
    %52 = vmatpush.bf16.msra.mxu0 0
    %53 = vmatpush.bf16.msra.mxu0 0
    %54 = vmatpush.bf16.msra.mxu0 0
    %55 = vmatpush.bf16.msra.mxu0 %v42
    %56 = vmatpush.bf16.msra.mxu0 %v41
    %57 = vmatmul.bf16.gmra.mxu0 %v47
    %v58 = vpop.f32.mrf.mxu0
    %v59 = vadd.f32 %v31, %v58
    %v60 = vpop.f32.mrf.mxu0
    %v61 = vadd.f32 %v31, %v60
    %62 = vdwg.mxu0
    %v63 = vld [vmem:[%s3] sm:$0xff]
    %v64 = vld [vmem:[%s3 + $0x8] sm:$0xff]
    %66 = vset.pattern.permute.xlu0 0
    %67 = vperm.xlu0 %66, %v63
    %v68 = vpop.permute.xlu0 %67
    %71 = vset.pattern.permute.xlu0 0
    %72 = vperm.xlu0 %71, %v64
    %v73 = vpop.permute.xlu0 %72
    %v75 = vsub.f32 %v59, %v68
    %v76 = vsub.f32 %v61, %v73
    %v77 = vmul.f32 %v75, 1.442695
    %v78 = vpow.pop %v77
    %v79 = vmul.f32 %v76, 1.442695
    %v80 = vpow.pop %v79
    %v81 = vld [vmem:[%s4] sm:$0xff]
    %v82 = vld [vmem:[%s4 + $0x8] sm:$0xff]
    %v83 = vrcp.pop %v81
    %v84 = vrcp.pop %v82
    %86 = vset.pattern.permute.xlu0 0
    %87 = vperm.xlu0 %86, %v83
    %v88 = vpop.permute.xlu0 %87
    %91 = vset.pattern.permute.xlu0 0
    %92 = vperm.xlu0 %91, %v84
    %v93 = vpop.permute.xlu0 %92
    %v95 = vmul.f32 %v78, %v88
    %v96 = vmul.f32 %v80, %v93
    %97 = vst [vmem:[#allocation2] sm:$0xff] %v95
    %98 = vst [vmem:[#allocation2 + $0x8] sm:$0xff] %v96
    // Predicated region
    $region22: #{gpt_forward.5} parent=1 // pred_check
      _
    $region23: #{gpt_forward.5} parent=1 // pred_check_branch
      %100 = sbr.rel (0) target = $region25
    $region24: #{gpt_forward.5} parent=1 // pred_region
      %102 = vsyncadd [#allocation3], 0
      %s103 = sshll.u32 [#allocation2], 4
      %s104 = int_to_ptr.vmem [resolvable:$true] %s103
      %s105 = sshll.u32 %s5, 4
      %s106 = int_to_ptr.hbm [resolvable:$true] %s105
      %111 = dma.vmem_to_hbm [thread:$0]  %s104, 256, %s106, [#allocation3], 128, 128, 8
    $region25: #{gpt_forward.5} parent=1 // pred_fallthru
      _
    // Predicated region
    $region26: #{gpt_forward.5} parent=1 // pred_check
      _
    $region27: #{gpt_forward.5} parent=1 // pred_check_branch
      %113 = sbr.rel (0) target = $region29
    $region28: #{gpt_forward.5} parent=1 // pred_region
      %115 = dma.done [#allocation3], 256
    $region29: #{gpt_forward.5} parent=1 // pred_fallthru
      _
    %116 = vsyncpa [#allocation3], 1

// kernel: gpt_forward.4
$region0: #{gpt_forward.4}
  #allocation0 [shape = 'u32[]', space=smem, size = 0x4, offset = 0x4, fixed_abs, tag = 'smem constant byte address 0x4 - core index']
  #allocation1 [shape = 'u32[72,128]{1,0:T(1,128)}', space=vmem, size = 0x9000, scoped, tag = 'internal scratch']
  %s0 = inlined_call_operand.vmem [shape: f32[16,32], index: 0, kind: input, shape index: {}]
  %s1 = inlined_call_operand.vmem [shape: bf16[32,128], index: 1, kind: input, shape index: {}]
  %s2 = inlined_call_operand.vmem [shape: f32[1,128], index: 2, kind: input, shape index: {}]
  %s3 = inlined_call_operand.vmem [shape: f32[16,1], index: 3, kind: output, shape index: {0}]
  %s4 = inlined_call_operand.vmem [shape: f32[16,1], index: 4, kind: output, shape index: {1}]
  %5 = xla_tuple %s3, %s4
  %s6 = sld [smem:[#allocation0]]
  $region34: #{gpt_forward.4} parent=0
    _
  %s8 = ssub.s32 1, %s6
  %s9 = scalar_select 0, %s8, %s6
  // Predicated region
  $region2: #{gpt_forward.4} parent=0 // pred_check
    _
  $region3: #{gpt_forward.4} parent=0 // pred_check_branch
    %11 = sbr.rel (0) target = $region5
  $region4: #{gpt_forward.4} parent=0 // pred_region
    _
  $region5: #{gpt_forward.4} parent=0 // pred_fallthru
    _
  // Predicated region
  $region6: #{gpt_forward.4} parent=0 // pred_check
    _
  $region7: #{gpt_forward.4} parent=0 // pred_check_branch
    %13 = sbr.rel (0) target = $region9
  $region8: #{gpt_forward.4} parent=0 // pred_region
    _
  $region9: #{gpt_forward.4} parent=0 // pred_fallthru
    _
  // Predicated region
  $region10: #{gpt_forward.4} parent=0 // pred_check
    _
  $region11: #{gpt_forward.4} parent=0 // pred_check_branch
    %15 = sbr.rel (0) target = $region13
  $region12: #{gpt_forward.4} parent=0 // pred_region
    _
  $region13: #{gpt_forward.4} parent=0 // pred_fallthru
    _
  %p17 = scmp.eq.s32.totalorder 0, 0
  // Predicated region
  $region14: #{gpt_forward.4} parent=0 // pred_check
    %p18 = pneg %p17
  $region15: #{gpt_forward.4} parent=0 // pred_check_branch
    %20 = sbr.rel (%p18) target = $region17
  $region16: #{gpt_forward.4} parent=0 // pred_region
    %vm21 = vcmask 7168
    %22 = vst.msk [vmem:[%s3] sm:$0xff] %vm21, -1e+30
    %23 = vst.msk [vmem:[%s3 + $0x8] sm:$0xff] %vm21, -1e+30
    %24 = vst.msk [vmem:[%s4] sm:$0xff] %vm21, 0.0
    %25 = vst.msk [vmem:[%s4 + $0x8] sm:$0xff] %vm21, 0.0
  $region17: #{gpt_forward.4} parent=0 // pred_fallthru
    _
  %v26 = vld [vmem:[%s0] sm:$0xff]
  %v27 = vld [vmem:[%s0 + $0x8] sm:$0xff]
  %v28 = vpack.c.bf16 %v27, %v26
  %v29 = vld [vmem:[%s1] sm:$0xf]
  %v30 = vld [vmem:[%s1 + $0x4] sm:$0xf]
  %v31 = vld [vmem:[%s1 + $0x8] sm:$0xf]
  %v32 = vld [vmem:[%s1 + $0xc] sm:$0xf]
  %v33 = vld [vmem:[%s2] sm:$0x1]
  %v35 = vperm.slane %v33, 0
  %v41 = vunpack.c.l.b16 %v29
  %v42 = vunpack.c.l.b16 %v30
  %v43 = vunpack.c.l.b16 %v31
  %v44 = vunpack.c.l.b16 %v32
  %v45 = vpack.c.b16 %v42, %v41
  %v46 = vpack.c.b16 %v44, %v43
  %vm49 = vcmask 261120
  %v51 = vsel %vm49, %v28, 0
  %53 = vmatpush.bf16.msra.mxu0 0
  %54 = vmatpush.bf16.msra.mxu0 0
  %55 = vmatpush.bf16.msra.mxu0 0
  %56 = vmatpush.bf16.msra.mxu0 0
  %57 = vmatpush.bf16.msra.mxu0 0
  %58 = vmatpush.bf16.msra.mxu0 0
  %59 = vmatpush.bf16.msra.mxu0 %v46
  %60 = vmatpush.bf16.msra.mxu0 %v45
  %61 = vmatmul.bf16.gmra.mxu0 %v51
  %v62 = vpop.f32.mrf.mxu0
  %v63 = vadd.f32 %v35, %v62
  %v64 = vpop.f32.mrf.mxu0
  %v65 = vadd.f32 %v35, %v64
  %66 = vdwg.mxu0
  %v67 = vld [vmem:[%s3] sm:$0xff]
  %v68 = vld [vmem:[%s3 + $0x8] sm:$0xff]
  %69 = vmax.xlane.f32.xlu0 %v63
  %v70 = vpop.xlane.xlu0 %69
  %71 = vmax.xlane.f32.xlu0 %v65
  %v72 = vpop.xlane.xlu0 %71
  %v73 = vmax.f32 %v67, %v70
  %v74 = vmax.f32 %v68, %v72
  %v75 = vld [vmem:[%s4] sm:$0xff]
  %v76 = vld [vmem:[%s4 + $0x8] sm:$0xff]
  %v77 = vsub.f32 %v67, %v73
  %v78 = vsub.f32 %v68, %v74
  %v79 = vmul.f32 %v77, 1.442695
  %v80 = vpow.pop %v79
  %v81 = vmul.f32 %v78, 1.442695
  %v82 = vpow.pop %v81
  %v83 = vmul.f32 %v75, %v80
  %v84 = vmul.f32 %v76, %v82
  %86 = vset.pattern.permute.xlu0 0
  %87 = vperm.xlu0 %86, %v73
  %v88 = vpop.permute.xlu0 %87
  %91 = vset.pattern.permute.xlu0 0
  %92 = vperm.xlu0 %91, %v74
  %v93 = vpop.permute.xlu0 %92
  %v95 = vsub.f32 %v63, %v88
  %v96 = vsub.f32 %v65, %v93
  %v97 = vmul.f32 %v95, 1.442695
  %v98 = vpow.pop %v97
  %v99 = vmul.f32 %v96, 1.442695
  %v100 = vpow.pop %v99
  %101 = vadd.xlane.f32.xlu0 %v98
  %v102 = vpop.xlane.xlu0 %101
  %103 = vadd.xlane.f32.xlu0 %v100
  %v104 = vpop.xlane.xlu0 %103
  %v105 = vadd.f32 %v83, %v102
  %v106 = vadd.f32 %v84, %v104
  %vm107 = vcmask 7168
  %108 = vst.msk [vmem:[%s4] sm:$0xff] %vm107, %v105
  %109 = vst.msk [vmem:[%s4 + $0x8] sm:$0xff] %vm107, %v106
  %110 = vst.msk [vmem:[%s3] sm:$0xff] %vm107, %v73
  %111 = vst.msk [vmem:[%s3 + $0x8] sm:$0xff] %vm107, %v74
  // Predicated region
  $region18: #{gpt_forward.4} parent=0 // pred_check
    _
  $region19: #{gpt_forward.4} parent=0 // pred_check_branch
    %113 = sbr.rel (0) target = $region21
  $region20: #{gpt_forward.4} parent=0 // pred_region
    _
  $region21: #{gpt_forward.4} parent=0 // pred_fallthru
    _
  // Predicated region
  $region22: #{gpt_forward.4} parent=0 // pred_check
    _
  $region23: #{gpt_forward.4} parent=0 // pred_check_branch
    %115 = sbr.rel (0) target = $region25
  $region24: #{gpt_forward.4} parent=0 // pred_region
    _
  $region25: #{gpt_forward.4} parent=0 // pred_fallthru
    _
  // Predicated region
  $region26: #{gpt_forward.4} parent=0 // pred_check
    _
  $region27: #{gpt_forward.4} parent=0 // pred_check_branch
    %117 = sbr.rel (0) target = $region29
  $region28: #{gpt_forward.4} parent=0 // pred_region
    _
  $region29: #{gpt_forward.4} parent=0 // pred_fallthru
    _
  // Predicated region
  $region30: #{gpt_forward.4} parent=0 // pred_check
    _
  $region31: #{gpt_forward.4} parent=0 // pred_check_branch
    %119 = sbr.rel (0) target = $region33
  $region32: #{gpt_forward.4} parent=0 // pred_region
    _
  $region33: #{gpt_forward.4} parent=0 // pred_fallthru
    _

// kernel: gpt_forward.3
$region0: #{gpt_forward.3}
  #allocation0 [shape = 'u32[]', space=smem, size = 0x4, offset = 0x4, fixed_abs, tag = 'smem constant byte address 0x4 - core index']
  #allocation1 [shape = 'u32[72,128]{1,0:T(1,128)}', space=vmem, size = 0x9000, scoped, tag = 'internal scratch']
  #allocation2 [shape = 'f32[16,32]{1,0:T(8,128)}', space=vmem, size = 0x2000, scoped, tag = 'scratch operand']
  %s0 = inlined_call_operand.vmem [shape: f32[16,32], index: 0, kind: input, shape index: {}]
  %s1 = inlined_call_operand.vmem [shape: f32[2,1,32], index: 1, kind: input, shape index: {}]
  %s2 = inlined_call_operand.vmem [shape: f32[2,1,32], index: 2, kind: input, shape index: {}]
  %s3 = inlined_call_operand.vmem [shape: bf16[2,32,96], index: 3, kind: input, shape index: {}]
  %s4 = inlined_call_operand.vmem [shape: f32[2,1,96], index: 4, kind: input, shape index: {}]
  %s5 = inlined_call_operand.vmem [shape: bf16[2,32,32], index: 5, kind: input, shape index: {}]
  %s6 = inlined_call_operand.vmem [shape: f32[2,1,32], index: 6, kind: input, shape index: {}]
  %s7 = inlined_call_operand.vmem [shape: f32[2,1,32], index: 7, kind: input, shape index: {}]
  %s8 = inlined_call_operand.vmem [shape: f32[2,1,32], index: 8, kind: input, shape index: {}]
  %s9 = inlined_call_operand.vmem [shape: bf16[2,32,64], index: 9, kind: input, shape index: {}]
  %s10 = inlined_call_operand.vmem [shape: f32[2,1,64], index: 10, kind: input, shape index: {}]
  %s11 = inlined_call_operand.vmem [shape: bf16[2,64,32], index: 11, kind: input, shape index: {}]
  %s12 = inlined_call_operand.vmem [shape: f32[2,1,32], index: 12, kind: input, shape index: {}]
  %s13 = inlined_call_operand.vmem [shape: f32[16,32], index: 13, kind: output, shape index: {}]
  %s14 = sld [smem:[#allocation0]]
  $region93: #{gpt_forward.3} parent=0
    _
  %s16 = ssub.s32 1, %s14
  %s17 = scalar_select 0, %s16, %s14
  loop: start=0, step=1, limit=4
  $region2: #{gpt_forward.3} parent=0 // loop_pre_header
    _
  $region3: #{gpt_forward.3} parent=0 // loop_header
    %s19 = sphi 0, %s23
    %p20 = scmp.ge.s32.totalorder %s19, 4
    %s26 = sphi 0, %s38
    %s27 = sphi 0, %s34
    %s28 = sphi 0, %s26
    %s29 = sphi 0, %s27
    %s30 = sphi 0, %s28
    %s31 = sphi 0, %s29
    %s41 = sphi 0, %s43
    %s44 = sphi 0, %s41
    %s45 = sphi 0, %s44
    %s61 = sphi 0, %s45
    %s67 = sphi 0, %s69
    %s70 = sphi 0, %s67
    %s71 = sphi 0, %s70
    %s87 = sphi 0, %s71
    %s93 = sphi 0, %s95
    %s96 = sphi 0, %s93
    %s97 = sphi 0, %s96
    %s113 = sphi 0, %s97
    %s119 = sphi 0, %s121
    %s122 = sphi 0, %s119
    %s123 = sphi 0, %s122
    %s139 = sphi 0, %s123
    %s145 = sphi 0, %s147
    %s148 = sphi 0, %s145
    %s149 = sphi 0, %s148
    %s165 = sphi 0, %s149
    %s171 = sphi 0, %s173
    %s174 = sphi 0, %s171
    %s175 = sphi 0, %s174
    %s191 = sphi 0, %s175
    %s197 = sphi 0, %s199
    %s200 = sphi 0, %s197
    %s201 = sphi 0, %s200
    %s217 = sphi 0, %s201
    %s223 = sphi 0, %s225
    %s226 = sphi 0, %s223
    %s227 = sphi 0, %s226
    %s243 = sphi 0, %s227
    %s249 = sphi 0, %s251
    %s252 = sphi 0, %s249
    %s253 = sphi 0, %s252
    %s269 = sphi 0, %s253
    %s275 = sphi 0, %s277
    %s278 = sphi 0, %s275
    %s279 = sphi 0, %s278
    %s295 = sphi 0, %s279
    %s301 = sphi 0, %s303
    %s304 = sphi 0, %s301
    %s305 = sphi 0, %s304
    %s321 = sphi 0, %s305
    %s327 = sphi 0, %s329
    %s330 = sphi 0, %s327
    %s331 = sphi 0, %s330
    %s347 = sphi 0, %s331
    %s353 = sphi 0, %s355
    %s356 = sphi 0, %s353
    %s357 = sphi 0, %s356
    %s373 = sphi 0, %s357
    %s379 = sphi 0, %s381
    %s382 = sphi 0, %s379
    %s383 = sphi 0, %s382
    %s399 = sphi 0, %s383
  $region4: #{gpt_forward.3} parent=0 // loop_header_branch
    %22 = sbr.rel (%p20) target = $region8
  $region5: #{gpt_forward.3} parent=0 // loop_body
    %s24 = ssub.s32 %s19, 1
    %s25 = ssub.s32 %s19, 2
    %s32 = sadd.s32 1, %s27
    %p33 = scmp.ge.s32.totalorder %s32, 2
    %s34 = scalar_select %p33, 0, %s32
    %s35 = sadd.s32 1, %s26
    %s36 = scalar_select %p33, %s35, %s26
    %p37 = scmp.ge.s32.totalorder %s36, 1
    %s38 = scalar_select %p37, 0, %s36
    %s39 = ssub.s32 %s26, %s38
    %p40 = scmp.eq.s32.totalorder %s39, 0
    %s42 = sadd.s32 %s41, 1
    %s43 = scalar_select %p40, %s41, %s42
    %p46 = pneg %p40
    %p47 = scmp.eq.s32.totalorder %s19, 1
    %p48 = por %p46, %p47
    %p49 = scmp.ne.s32.totalorder %s41, %s44
    %p50 = scmp.eq.s32.totalorder %s19, 0
    %p51 = por %p49, %p50
    %p52 = scmp.ne.s32.totalorder %s41, %s44
    %p53 = scmp.eq.s32.totalorder %s24, 1
    %p54 = por %p52, %p53
    %p55 = scmp.ne.s32.totalorder %s44, %s45
    %p56 = scmp.eq.s32.totalorder %s24, 0
    %p57 = por %p55, %p56
    %p58 = scmp.ne.s32.totalorder %s44, %s45
    %p59 = scmp.eq.s32.totalorder %s25, 1
    %p60 = por %p58, %p59
    %p62 = scmp.ne.s32.totalorder %s45, %s61
    %p63 = scmp.eq.s32.totalorder %s25, 0
    %p64 = por %p62, %p63
    %s65 = ssub.s32 %s27, %s34
    %p66 = scmp.eq.s32.totalorder %s65, 0
    %s68 = sadd.s32 %s67, 1
    %s69 = scalar_select %p66, %s67, %s68
    %p72 = pneg %p66
    %p73 = scmp.eq.s32.totalorder %s19, 1
    %p74 = por %p72, %p73
    %p75 = scmp.ne.s32.totalorder %s67, %s70
    %p76 = scmp.eq.s32.totalorder %s19, 0
    %p77 = por %p75, %p76
    %p78 = scmp.ne.s32.totalorder %s67, %s70
    %p79 = scmp.eq.s32.totalorder %s24, 1
    %p80 = por %p78, %p79
    %p81 = scmp.ne.s32.totalorder %s70, %s71
    %p82 = scmp.eq.s32.totalorder %s24, 0
    %p83 = por %p81, %p82
    %p84 = scmp.ne.s32.totalorder %s70, %s71
    %p85 = scmp.eq.s32.totalorder %s25, 1
    %p86 = por %p84, %p85
    %p88 = scmp.ne.s32.totalorder %s71, %s87
    %p89 = scmp.eq.s32.totalorder %s25, 0
    %p90 = por %p88, %p89
    %s91 = ssub.s32 %s27, %s34
    %p92 = scmp.eq.s32.totalorder %s91, 0
    %s94 = sadd.s32 %s93, 1
    %s95 = scalar_select %p92, %s93, %s94
    %p98 = pneg %p92
    %p99 = scmp.eq.s32.totalorder %s19, 1
    %p100 = por %p98, %p99
    %p101 = scmp.ne.s32.totalorder %s93, %s96
    %p102 = scmp.eq.s32.totalorder %s19, 0
    %p103 = por %p101, %p102
    %p104 = scmp.ne.s32.totalorder %s93, %s96
    %p105 = scmp.eq.s32.totalorder %s24, 1
    %p106 = por %p104, %p105
    %p107 = scmp.ne.s32.totalorder %s96, %s97
    %p108 = scmp.eq.s32.totalorder %s24, 0
    %p109 = por %p107, %p108
    %p110 = scmp.ne.s32.totalorder %s96, %s97
    %p111 = scmp.eq.s32.totalorder %s25, 1
    %p112 = por %p110, %p111
    %p114 = scmp.ne.s32.totalorder %s97, %s113
    %p115 = scmp.eq.s32.totalorder %s25, 0
    %p116 = por %p114, %p115
    %s117 = ssub.s32 %s27, %s34
    %p118 = scmp.eq.s32.totalorder %s117, 0
    %s120 = sadd.s32 %s119, 1
    %s121 = scalar_select %p118, %s119, %s120
    %p124 = pneg %p118
    %p125 = scmp.eq.s32.totalorder %s19, 1
    %p126 = por %p124, %p125
    %p127 = scmp.ne.s32.totalorder %s119, %s122
    %p128 = scmp.eq.s32.totalorder %s19, 0
    %p129 = por %p127, %p128
    %p130 = scmp.ne.s32.totalorder %s119, %s122
    %p131 = scmp.eq.s32.totalorder %s24, 1
    %p132 = por %p130, %p131
    %p133 = scmp.ne.s32.totalorder %s122, %s123
    %p134 = scmp.eq.s32.totalorder %s24, 0
    %p135 = por %p133, %p134
    %p136 = scmp.ne.s32.totalorder %s122, %s123
    %p137 = scmp.eq.s32.totalorder %s25, 1
    %p138 = por %p136, %p137
    %p140 = scmp.ne.s32.totalorder %s123, %s139
    %p141 = scmp.eq.s32.totalorder %s25, 0
    %p142 = por %p140, %p141
    %s143 = ssub.s32 %s27, %s34
    %p144 = scmp.eq.s32.totalorder %s143, 0
    %s146 = sadd.s32 %s145, 1
    %s147 = scalar_select %p144, %s145, %s146
    %p150 = pneg %p144
    %p151 = scmp.eq.s32.totalorder %s19, 1
    %p152 = por %p150, %p151
    %p153 = scmp.ne.s32.totalorder %s145, %s148
    %p154 = scmp.eq.s32.totalorder %s19, 0
    %p155 = por %p153, %p154
    %p156 = scmp.ne.s32.totalorder %s145, %s148
    %p157 = scmp.eq.s32.totalorder %s24, 1
    %p158 = por %p156, %p157
    %p159 = scmp.ne.s32.totalorder %s148, %s149
    %p160 = scmp.eq.s32.totalorder %s24, 0
    %p161 = por %p159, %p160
    %p162 = scmp.ne.s32.totalorder %s148, %s149
    %p163 = scmp.eq.s32.totalorder %s25, 1
    %p164 = por %p162, %p163
    %p166 = scmp.ne.s32.totalorder %s149, %s165
    %p167 = scmp.eq.s32.totalorder %s25, 0
    %p168 = por %p166, %p167
    %s169 = ssub.s32 %s27, %s34
    %p170 = scmp.eq.s32.totalorder %s169, 0
    %s172 = sadd.s32 %s171, 1
    %s173 = scalar_select %p170, %s171, %s172
    %p176 = pneg %p170
    %p177 = scmp.eq.s32.totalorder %s19, 1
    %p178 = por %p176, %p177
    %p179 = scmp.ne.s32.totalorder %s171, %s174
    %p180 = scmp.eq.s32.totalorder %s19, 0
    %p181 = por %p179, %p180
    %p182 = scmp.ne.s32.totalorder %s171, %s174
    %p183 = scmp.eq.s32.totalorder %s24, 1
    %p184 = por %p182, %p183
    %p185 = scmp.ne.s32.totalorder %s174, %s175
    %p186 = scmp.eq.s32.totalorder %s24, 0
    %p187 = por %p185, %p186
    %p188 = scmp.ne.s32.totalorder %s174, %s175
    %p189 = scmp.eq.s32.totalorder %s25, 1
    %p190 = por %p188, %p189
    %p192 = scmp.ne.s32.totalorder %s175, %s191
    %p193 = scmp.eq.s32.totalorder %s25, 0
    %p194 = por %p192, %p193
    %s195 = ssub.s32 %s27, %s34
    %p196 = scmp.eq.s32.totalorder %s195, 0
    %s198 = sadd.s32 %s197, 1
    %s199 = scalar_select %p196, %s197, %s198
    %p202 = pneg %p196
    %p203 = scmp.eq.s32.totalorder %s19, 1
    %p204 = por %p202, %p203
    %p205 = scmp.ne.s32.totalorder %s197, %s200
    %p206 = scmp.eq.s32.totalorder %s19, 0
    %p207 = por %p205, %p206
    %p208 = scmp.ne.s32.totalorder %s197, %s200
    %p209 = scmp.eq.s32.totalorder %s24, 1
    %p210 = por %p208, %p209
    %p211 = scmp.ne.s32.totalorder %s200, %s201
    %p212 = scmp.eq.s32.totalorder %s24, 0
    %p213 = por %p211, %p212
    %p214 = scmp.ne.s32.totalorder %s200, %s201
    %p215 = scmp.eq.s32.totalorder %s25, 1
    %p216 = por %p214, %p215
    %p218 = scmp.ne.s32.totalorder %s201, %s217
    %p219 = scmp.eq.s32.totalorder %s25, 0
    %p220 = por %p218, %p219
    %s221 = ssub.s32 %s27, %s34
    %p222 = scmp.eq.s32.totalorder %s221, 0
    %s224 = sadd.s32 %s223, 1
    %s225 = scalar_select %p222, %s223, %s224
    %p228 = pneg %p222
    %p229 = scmp.eq.s32.totalorder %s19, 1
    %p230 = por %p228, %p229
    %p231 = scmp.ne.s32.totalorder %s223, %s226
    %p232 = scmp.eq.s32.totalorder %s19, 0
    %p233 = por %p231, %p232
    %p234 = scmp.ne.s32.totalorder %s223, %s226
    %p235 = scmp.eq.s32.totalorder %s24, 1
    %p236 = por %p234, %p235
    %p237 = scmp.ne.s32.totalorder %s226, %s227
    %p238 = scmp.eq.s32.totalorder %s24, 0
    %p239 = por %p237, %p238
    %p240 = scmp.ne.s32.totalorder %s226, %s227
    %p241 = scmp.eq.s32.totalorder %s25, 1
    %p242 = por %p240, %p241
    %p244 = scmp.ne.s32.totalorder %s227, %s243
    %p245 = scmp.eq.s32.totalorder %s25, 0
    %p246 = por %p244, %p245
    %s247 = ssub.s32 %s27, %s34
    %p248 = scmp.eq.s32.totalorder %s247, 0
    %s250 = sadd.s32 %s249, 1
    %s251 = scalar_select %p248, %s249, %s250
    %p254 = pneg %p248
    %p255 = scmp.eq.s32.totalorder %s19, 1
    %p256 = por %p254, %p255
    %p257 = scmp.ne.s32.totalorder %s249, %s252
    %p258 = scmp.eq.s32.totalorder %s19, 0
    %p259 = por %p257, %p258
    %p260 = scmp.ne.s32.totalorder %s249, %s252
    %p261 = scmp.eq.s32.totalorder %s24, 1
    %p262 = por %p260, %p261
    %p263 = scmp.ne.s32.totalorder %s252, %s253
    %p264 = scmp.eq.s32.totalorder %s24, 0
    %p265 = por %p263, %p264
    %p266 = scmp.ne.s32.totalorder %s252, %s253
    %p267 = scmp.eq.s32.totalorder %s25, 1
    %p268 = por %p266, %p267
    %p270 = scmp.ne.s32.totalorder %s253, %s269
    %p271 = scmp.eq.s32.totalorder %s25, 0
    %p272 = por %p270, %p271
    %s273 = ssub.s32 %s27, %s34
    %p274 = scmp.eq.s32.totalorder %s273, 0
    %s276 = sadd.s32 %s275, 1
    %s277 = scalar_select %p274, %s275, %s276
    %p280 = pneg %p274
    %p281 = scmp.eq.s32.totalorder %s19, 1
    %p282 = por %p280, %p281
    %p283 = scmp.ne.s32.totalorder %s275, %s278
    %p284 = scmp.eq.s32.totalorder %s19, 0
    %p285 = por %p283, %p284
    %p286 = scmp.ne.s32.totalorder %s275, %s278
    %p287 = scmp.eq.s32.totalorder %s24, 1
    %p288 = por %p286, %p287
    %p289 = scmp.ne.s32.totalorder %s278, %s279
    %p290 = scmp.eq.s32.totalorder %s24, 0
    %p291 = por %p289, %p290
    %p292 = scmp.ne.s32.totalorder %s278, %s279
    %p293 = scmp.eq.s32.totalorder %s25, 1
    %p294 = por %p292, %p293
    %p296 = scmp.ne.s32.totalorder %s279, %s295
    %p297 = scmp.eq.s32.totalorder %s25, 0
    %p298 = por %p296, %p297
    %s299 = ssub.s32 %s27, %s34
    %p300 = scmp.eq.s32.totalorder %s299, 0
    %s302 = sadd.s32 %s301, 1
    %s303 = scalar_select %p300, %s301, %s302
    %p306 = pneg %p300
    %p307 = scmp.eq.s32.totalorder %s19, 1
    %p308 = por %p306, %p307
    %p309 = scmp.ne.s32.totalorder %s301, %s304
    %p310 = scmp.eq.s32.totalorder %s19, 0
    %p311 = por %p309, %p310
    %p312 = scmp.ne.s32.totalorder %s301, %s304
    %p313 = scmp.eq.s32.totalorder %s24, 1
    %p314 = por %p312, %p313
    %p315 = scmp.ne.s32.totalorder %s304, %s305
    %p316 = scmp.eq.s32.totalorder %s24, 0
    %p317 = por %p315, %p316
    %p318 = scmp.ne.s32.totalorder %s304, %s305
    %p319 = scmp.eq.s32.totalorder %s25, 1
    %p320 = por %p318, %p319
    %p322 = scmp.ne.s32.totalorder %s305, %s321
    %p323 = scmp.eq.s32.totalorder %s25, 0
    %p324 = por %p322, %p323
    %s325 = ssub.s32 %s27, %s34
    %p326 = scmp.eq.s32.totalorder %s325, 0
    %s328 = sadd.s32 %s327, 1
    %s329 = scalar_select %p326, %s327, %s328
    %p332 = pneg %p326
    %p333 = scmp.eq.s32.totalorder %s19, 1
    %p334 = por %p332, %p333
    %p335 = scmp.ne.s32.totalorder %s327, %s330
    %p336 = scmp.eq.s32.totalorder %s19, 0
    %p337 = por %p335, %p336
    %p338 = scmp.ne.s32.totalorder %s327, %s330
    %p339 = scmp.eq.s32.totalorder %s24, 1
    %p340 = por %p338, %p339
    %p341 = scmp.ne.s32.totalorder %s330, %s331
    %p342 = scmp.eq.s32.totalorder %s24, 0
    %p343 = por %p341, %p342
    %p344 = scmp.ne.s32.totalorder %s330, %s331
    %p345 = scmp.eq.s32.totalorder %s25, 1
    %p346 = por %p344, %p345
    %p348 = scmp.ne.s32.totalorder %s331, %s347
    %p349 = scmp.eq.s32.totalorder %s25, 0
    %p350 = por %p348, %p349
    %s351 = ssub.s32 %s27, %s34
    %p352 = scmp.eq.s32.totalorder %s351, 0
    %s354 = sadd.s32 %s353, 1
    %s355 = scalar_select %p352, %s353, %s354
    %p358 = pneg %p352
    %p359 = scmp.eq.s32.totalorder %s19, 1
    %p360 = por %p358, %p359
    %p361 = scmp.ne.s32.totalorder %s353, %s356
    %p362 = scmp.eq.s32.totalorder %s19, 0
    %p363 = por %p361, %p362
    %p364 = scmp.ne.s32.totalorder %s353, %s356
    %p365 = scmp.eq.s32.totalorder %s24, 1
    %p366 = por %p364, %p365
    %p367 = scmp.ne.s32.totalorder %s356, %s357
    %p368 = scmp.eq.s32.totalorder %s24, 0
    %p369 = por %p367, %p368
    %p370 = scmp.ne.s32.totalorder %s356, %s357
    %p371 = scmp.eq.s32.totalorder %s25, 1
    %p372 = por %p370, %p371
    %p374 = scmp.ne.s32.totalorder %s357, %s373
    %p375 = scmp.eq.s32.totalorder %s25, 0
    %p376 = por %p374, %p375
    %s377 = ssub.s32 %s26, %s38
    %p378 = scmp.eq.s32.totalorder %s377, 0
    %s380 = sadd.s32 %s379, 1
    %s381 = scalar_select %p378, %s379, %s380
    %p384 = pneg %p378
    %p385 = scmp.eq.s32.totalorder %s19, 1
    %p386 = por %p384, %p385
    %p387 = scmp.ne.s32.totalorder %s379, %s382
    %p388 = scmp.eq.s32.totalorder %s19, 0
    %p389 = por %p387, %p388
    %p390 = scmp.ne.s32.totalorder %s379, %s382
    %p391 = scmp.eq.s32.totalorder %s24, 1
    %p392 = por %p390, %p391
    %p393 = scmp.ne.s32.totalorder %s382, %s383
    %p394 = scmp.eq.s32.totalorder %s24, 0
    %p395 = por %p393, %p394
    %p396 = scmp.ne.s32.totalorder %s382, %s383
    %p397 = scmp.eq.s32.totalorder %s25, 1
    %p398 = por %p396, %p397
    %p400 = scmp.ne.s32.totalorder %s383, %s399
    %p401 = scmp.eq.s32.totalorder %s25, 0
    %p402 = por %p400, %p401
    %p403 = scmp.le.s32.totalorder 1, %s19
    %p404 = scmp.lt.s32.totalorder %s19, 3
    %p405 = pnand %p403, %p404
    %p406 = pneg %p405
    // Predicated region
    $region9: #{gpt_forward.3} parent=5 // pred_check
      _
    $region10: #{gpt_forward.3} parent=5 // pred_check_branch
      %408 = sbr.rel (%p405) target = $region12
    $region11: #{gpt_forward.3} parent=5 // pred_region
      %s409 = ssub.s32 %s19, 1
      // Predicated region
      $region13: #{gpt_forward.3} parent=11 // pred_check
        %p410 = pneg %p57
      $region14: #{gpt_forward.3} parent=11 // pred_check_branch
        %412 = sbr.rel (%p410) target = $region16
      $region15: #{gpt_forward.3} parent=11 // pred_region
        %s413 = smul.u32 2, %s28
        %p414 = scmp.lt.s32.totalorder %s413, 1
        %s415 = scalar_select %p414, %s413, 1
        %s416 = smul.addr %s415, 8
        %s417 = scalar_lea.vmem %s0, %s416
        %s418 = smul.u32 2, %s28
      $region16: #{gpt_forward.3} parent=11 // pred_fallthru
        _
    $region12: #{gpt_forward.3} parent=5 // pred_fallthru
      _
    %p419 = scmp.lt.s32.totalorder %s19, 2
    // Predicated region
    $region17: #{gpt_forward.3} parent=5 // pred_check
      %p420 = pneg %p419
    $region18: #{gpt_forward.3} parent=5 // pred_check_branch
      %422 = sbr.rel (%p420) target = $region20
    $region19: #{gpt_forward.3} parent=5 // pred_region
      // Predicated region
      $region21: #{gpt_forward.3} parent=19 // pred_check
        %p423 = pneg %p77
      $region22: #{gpt_forward.3} parent=19 // pred_check_branch
        %425 = sbr.rel (%p423) target = $region24
      $region23: #{gpt_forward.3} parent=19 // pred_region
        %p426 = scmp.lt.s32.totalorder %s27, 1
        %s427 = scalar_select %p426, %s27, 1
        %s428 = scalar_lea.vmem %s1, %s427
      $region24: #{gpt_forward.3} parent=19 // pred_fallthru
        _
      // Predicated region
      $region25: #{gpt_forward.3} parent=19 // pred_check
        %p429 = pneg %p103
      $region26: #{gpt_forward.3} parent=19 // pred_check_branch
        %431 = sbr.rel (%p429) target = $region28
      $region27: #{gpt_forward.3} parent=19 // pred_region
        %p432 = scmp.lt.s32.totalorder %s27, 1
        %s433 = scalar_select %p432, %s27, 1
        %s434 = scalar_lea.vmem %s2, %s433
      $region28: #{gpt_forward.3} parent=19 // pred_fallthru
        _
      // Predicated region
      $region29: #{gpt_forward.3} parent=19 // pred_check
        %p435 = pneg %p129
      $region30: #{gpt_forward.3} parent=19 // pred_check_branch
        %437 = sbr.rel (%p435) target = $region32
      $region31: #{gpt_forward.3} parent=19 // pred_region
        %p438 = scmp.lt.s32.totalorder %s27, 1
        %s439 = scalar_select %p438, %s27, 1
        %s440 = smul.addr %s439, 4
        %s441 = smul.addr %s440, 4
        %s442 = scalar_lea.vmem %s3, %s441
      $region32: #{gpt_forward.3} parent=19 // pred_fallthru
        _
      // Predicated region
      $region33: #{gpt_forward.3} parent=19 // pred_check
        %p443 = pneg %p155
      $region34: #{gpt_forward.3} parent=19 // pred_check_branch
        %445 = sbr.rel (%p443) target = $region36
      $region35: #{gpt_forward.3} parent=19 // pred_region
        %p446 = scmp.lt.s32.totalorder %s27, 1
        %s447 = scalar_select %p446, %s27, 1
        %s448 = scalar_lea.vmem %s4, %s447
      $region36: #{gpt_forward.3} parent=19 // pred_fallthru
        _
      // Predicated region
      $region37: #{gpt_forward.3} parent=19 // pred_check
        %p449 = pneg %p181
      $region38: #{gpt_forward.3} parent=19 // pred_check_branch
        %451 = sbr.rel (%p449) target = $region40
      $region39: #{gpt_forward.3} parent=19 // pred_region
        %p452 = scmp.lt.s32.totalorder %s27, 1
        %s453 = scalar_select %p452, %s27, 1
        %s454 = smul.addr %s453, 4
        %s455 = smul.addr %s454, 4
        %s456 = scalar_lea.vmem %s5, %s455
      $region40: #{gpt_forward.3} parent=19 // pred_fallthru
        _
      // Predicated region
      $region41: #{gpt_forward.3} parent=19 // pred_check
        %p457 = pneg %p207
      $region42: #{gpt_forward.3} parent=19 // pred_check_branch
        %459 = sbr.rel (%p457) target = $region44
      $region43: #{gpt_forward.3} parent=19 // pred_region
        %p460 = scmp.lt.s32.totalorder %s27, 1
        %s461 = scalar_select %p460, %s27, 1
        %s462 = scalar_lea.vmem %s6, %s461
      $region44: #{gpt_forward.3} parent=19 // pred_fallthru
        _
      // Predicated region
      $region45: #{gpt_forward.3} parent=19 // pred_check
        %p463 = pneg %p233
      $region46: #{gpt_forward.3} parent=19 // pred_check_branch
        %465 = sbr.rel (%p463) target = $region48
      $region47: #{gpt_forward.3} parent=19 // pred_region
        %p466 = scmp.lt.s32.totalorder %s27, 1
        %s467 = scalar_select %p466, %s27, 1
        %s468 = scalar_lea.vmem %s7, %s467
      $region48: #{gpt_forward.3} parent=19 // pred_fallthru
        _
      // Predicated region
      $region49: #{gpt_forward.3} parent=19 // pred_check
        %p469 = pneg %p259
      $region50: #{gpt_forward.3} parent=19 // pred_check_branch
        %471 = sbr.rel (%p469) target = $region52
      $region51: #{gpt_forward.3} parent=19 // pred_region
        %p472 = scmp.lt.s32.totalorder %s27, 1
        %s473 = scalar_select %p472, %s27, 1
        %s474 = scalar_lea.vmem %s8, %s473
      $region52: #{gpt_forward.3} parent=19 // pred_fallthru
        _
      // Predicated region
      $region53: #{gpt_forward.3} parent=19 // pred_check
        %p475 = pneg %p285
      $region54: #{gpt_forward.3} parent=19 // pred_check_branch
        %477 = sbr.rel (%p475) target = $region56
      $region55: #{gpt_forward.3} parent=19 // pred_region
        %p478 = scmp.lt.s32.totalorder %s27, 1
        %s479 = scalar_select %p478, %s27, 1
        %s480 = smul.addr %s479, 4
        %s481 = smul.addr %s480, 4
        %s482 = scalar_lea.vmem %s9, %s481
      $region56: #{gpt_forward.3} parent=19 // pred_fallthru
        _
      // Predicated region
      $region57: #{gpt_forward.3} parent=19 // pred_check
        %p483 = pneg %p311
      $region58: #{gpt_forward.3} parent=19 // pred_check_branch
        %485 = sbr.rel (%p483) target = $region60
      $region59: #{gpt_forward.3} parent=19 // pred_region
        %p486 = scmp.lt.s32.totalorder %s27, 1
        %s487 = scalar_select %p486, %s27, 1
        %s488 = scalar_lea.vmem %s10, %s487
      $region60: #{gpt_forward.3} parent=19 // pred_fallthru
        _
      // Predicated region
      $region61: #{gpt_forward.3} parent=19 // pred_check
        %p489 = pneg %p337
      $region62: #{gpt_forward.3} parent=19 // pred_check_branch
        %491 = sbr.rel (%p489) target = $region64
      $region63: #{gpt_forward.3} parent=19 // pred_region
        %p492 = scmp.lt.s32.totalorder %s27, 1
        %s493 = scalar_select %p492, %s27, 1
        %s494 = smul.addr %s493, 8
        %s495 = smul.addr %s494, 4
        %s496 = scalar_lea.vmem %s11, %s495
      $region64: #{gpt_forward.3} parent=19 // pred_fallthru
        _
      // Predicated region
      $region65: #{gpt_forward.3} parent=19 // pred_check
        %p497 = pneg %p363
      $region66: #{gpt_forward.3} parent=19 // pred_check_branch
        %499 = sbr.rel (%p497) target = $region68
      $region67: #{gpt_forward.3} parent=19 // pred_region
        %p500 = scmp.lt.s32.totalorder %s27, 1
        %s501 = scalar_select %p500, %s27, 1
        %s502 = scalar_lea.vmem %s12, %s501
      $region68: #{gpt_forward.3} parent=19 // pred_fallthru
        _
    $region20: #{gpt_forward.3} parent=5 // pred_fallthru
      _
    %p503 = scmp.le.s32.totalorder 1, %s19
    %p504 = scmp.lt.s32.totalorder %s19, 3
    %p505 = pnand %p503, %p504
    %p506 = pneg %p505
    // Predicated region
    $region69: #{gpt_forward.3} parent=5 // pred_check
      _
    $region70: #{gpt_forward.3} parent=5 // pred_check_branch
      %508 = sbr.rel (%p505) target = $region72
    $region71: #{gpt_forward.3} parent=5 // pred_region
      %s509 = ssub.s32 %s19, 1
      %s510 = smul.u32 2, %s28
      %p511 = scmp.lt.s32.totalorder %s510, 1
      %s512 = scalar_select %p511, %s510, 1
      %s513 = smul.addr %s512, 8
      %s514 = scalar_lea.vmem %s0, %s513
      %p515 = pneg %p57
      %p516 = pneg %p54
      %p517 = scmp.lt.s32.totalorder %s29, 1
      %s518 = scalar_select %p517, %s29, 1
      %s519 = scalar_lea.vmem %s1, %s518
      %p520 = pneg %p83
      %p521 = pneg %p80
      %p522 = scmp.lt.s32.totalorder %s29, 1
      %s523 = scalar_select %p522, %s29, 1
      %s524 = scalar_lea.vmem %s2, %s523
      %p525 = pneg %p109
      %p526 = pneg %p106
      %p527 = scmp.lt.s32.totalorder %s29, 1
      %s528 = scalar_select %p527, %s29, 1
      %s529 = smul.addr %s528, 4
      %s530 = smul.addr %s529, 4
      %s531 = scalar_lea.vmem %s3, %s530
      %p532 = pneg %p135
      %p533 = pneg %p132
      %p534 = scmp.lt.s32.totalorder %s29, 1
      %s535 = scalar_select %p534, %s29, 1
      %s536 = scalar_lea.vmem %s4, %s535
      %p537 = pneg %p161
      %p538 = pneg %p158
      %p539 = scmp.lt.s32.totalorder %s29, 1
      %s540 = scalar_select %p539, %s29, 1
      %s541 = smul.addr %s540, 4
      %s542 = smul.addr %s541, 4
      %s543 = scalar_lea.vmem %s5, %s542
      %p544 = pneg %p187
      %p545 = pneg %p184
      %p546 = scmp.lt.s32.totalorder %s29, 1
      %s547 = scalar_select %p546, %s29, 1
      %s548 = scalar_lea.vmem %s6, %s547
      %p549 = pneg %p213
      %p550 = pneg %p210
      %p551 = scmp.lt.s32.totalorder %s29, 1
      %s552 = scalar_select %p551, %s29, 1
      %s553 = scalar_lea.vmem %s7, %s552
      %p554 = pneg %p239
      %p555 = pneg %p236
      %p556 = scmp.lt.s32.totalorder %s29, 1
      %s557 = scalar_select %p556, %s29, 1
      %s558 = scalar_lea.vmem %s8, %s557
      %p559 = pneg %p265
      %p560 = pneg %p262
      %p561 = scmp.lt.s32.totalorder %s29, 1
      %s562 = scalar_select %p561, %s29, 1
      %s563 = smul.addr %s562, 4
      %s564 = smul.addr %s563, 4
      %s565 = scalar_lea.vmem %s9, %s564
      %p566 = pneg %p291
      %p567 = pneg %p288
      %p568 = scmp.lt.s32.totalorder %s29, 1
      %s569 = scalar_select %p568, %s29, 1
      %s570 = scalar_lea.vmem %s10, %s569
      %p571 = pneg %p317
      %p572 = pneg %p314
      %p573 = scmp.lt.s32.totalorder %s29, 1
      %s574 = scalar_select %p573, %s29, 1
      %s575 = smul.addr %s574, 8
      %s576 = smul.addr %s575, 4
      %s577 = scalar_lea.vmem %s11, %s576
      %p578 = pneg %p343
      %p579 = pneg %p340
      %p580 = scmp.lt.s32.totalorder %s29, 1
      %s581 = scalar_select %p580, %s29, 1
      %s582 = scalar_lea.vmem %s12, %s581
      %p583 = pneg %p369
      %p584 = pneg %p366
      %p585 = pneg %p395
      %p586 = pneg %p392
      %s587 = smul.u32 2, %s28
      %p588 = scmp.lt.s32.totalorder %s587, 1
      %s589 = scalar_select %p588, %s587, 1
      %s590 = smul.addr %s589, 8
      %s591 = scalar_lea.vmem %s13, %s590
      %s592 = smul.u32 2, %s28
      %p593 = scmp.lt.s32.totalorder %s592, 1
      %s594 = scalar_select %p593, %s592, 1
      %s595 = smul.addr %s594, 8
      %s596 = scalar_lea.vmem %s0, %s595
      %s597 = smul.u32 2, %s28
      %p598 = scmp.lt.s32.totalorder %s29, 1
      %s599 = scalar_select %p598, %s29, 1
      %s600 = scalar_lea.vmem %s1, %s599
      %p601 = scmp.lt.s32.totalorder %s29, 1
      %s602 = scalar_select %p601, %s29, 1
      %s603 = scalar_lea.vmem %s2, %s602
      %p604 = scmp.lt.s32.totalorder %s29, 1
      %s605 = scalar_select %p604, %s29, 1
      %s606 = smul.addr %s605, 4
      %s607 = smul.addr %s606, 4
      %s608 = scalar_lea.vmem %s3, %s607
      %p609 = scmp.lt.s32.totalorder %s29, 1
      %s610 = scalar_select %p609, %s29, 1
      %s611 = scalar_lea.vmem %s4, %s610
      %p612 = scmp.lt.s32.totalorder %s29, 1
      %s613 = scalar_select %p612, %s29, 1
      %s614 = smul.addr %s613, 4
      %s615 = smul.addr %s614, 4
      %s616 = scalar_lea.vmem %s5, %s615
      %p617 = scmp.lt.s32.totalorder %s29, 1
      %s618 = scalar_select %p617, %s29, 1
      %s619 = scalar_lea.vmem %s6, %s618
      %p620 = scmp.lt.s32.totalorder %s29, 1
      %s621 = scalar_select %p620, %s29, 1
      %s622 = scalar_lea.vmem %s7, %s621
      %p623 = scmp.lt.s32.totalorder %s29, 1
      %s624 = scalar_select %p623, %s29, 1
      %s625 = scalar_lea.vmem %s8, %s624
      %p626 = scmp.lt.s32.totalorder %s29, 1
      %s627 = scalar_select %p626, %s29, 1
      %s628 = smul.addr %s627, 4
      %s629 = smul.addr %s628, 4
      %s630 = scalar_lea.vmem %s9, %s629
      %p631 = scmp.lt.s32.totalorder %s29, 1
      %s632 = scalar_select %p631, %s29, 1
      %s633 = scalar_lea.vmem %s10, %s632
      %p634 = scmp.lt.s32.totalorder %s29, 1
      %s635 = scalar_select %p634, %s29, 1
      %s636 = smul.addr %s635, 8
      %s637 = smul.addr %s636, 4
      %s638 = scalar_lea.vmem %s11, %s637
      %p639 = scmp.lt.s32.totalorder %s29, 1
      %s640 = scalar_select %p639, %s29, 1
      %s641 = scalar_lea.vmem %s12, %s640
      %s642 = smul.u32 2, %s28
      %p643 = scmp.lt.s32.totalorder %s642, 1
      %s644 = scalar_select %p643, %s642, 1
      %s645 = smul.addr %s644, 8
      %s646 = scalar_lea.vmem %s13, %s645
      %s647 = smul.u32 2, %s28
      %p649 = scmp.eq.s32.totalorder %s29, 0
      // Predicated region
      $region73: #{gpt_forward.3} parent=71 // pred_check
        %p650 = pneg %p649
      $region74: #{gpt_forward.3} parent=71 // pred_check_branch
        %652 = sbr.rel (%p650) target = $region76
      $region75: #{gpt_forward.3} parent=71 // pred_region
        %v653 = vld [vmem:[%s596] sm:$0xff]
        %v654 = vld [vmem:[%s596 + $0x8] sm:$0xff]
        %vm655 = vcmask 261120
        %656 = vst.msk [vmem:[#allocation2] sm:$0xff] %vm655, %v653
        %657 = vst.msk [vmem:[#allocation2 + $0x8] sm:$0xff] %vm655, %v654
      $region76: #{gpt_forward.3} parent=71 // pred_fallthru
        _
      %v658 = vld [vmem:[#allocation2] sm:$0xff]
      %v659 = vld [vmem:[#allocation2 + $0x8] sm:$0xff]
      %v660 = vld [vmem:[%s600] sm:$0x1]
      %v661 = vld [vmem:[%s603] sm:$0x1]
      %vm662 = vcmask 261120
      %v663 = vsel %vm662, %v658, 0.0
      %664 = vadd.xlane.f32.xlu0 %v663
      %v665 = vpop.xlane.xlu0 %664
      %v666 = vsel %vm662, %v659, 0.0
      %667 = vadd.xlane.f32.xlu0 %v666
      %v668 = vpop.xlane.xlu0 %667
      %v669 = vrcp.pop 32.0
      %v670 = vmul.f32 32.0, %v669
      %v671 = vsub.f32 1.0, %v670
      %v672 = vmul.f32 %v669, %v671
      %v673 = vadd.f32 %v669, %v672
      %vm674 = vweird.f32 %v669
      %v675 = vsel %vm674, %v669, %v673
      %v676 = vmul.f32 %v665, %v675
      %v677 = vmul.f32 %v668, %v675
      %v678 = vsub.f32 %v658, %v676
      %v679 = vsub.f32 %v659, %v677
      %v680 = vmul.f32 %v678, %v678
      %v681 = vmul.f32 %v679, %v679
      %v682 = vsel %vm662, %v680, 0.0
      %683 = vadd.xlane.f32.xlu0 %v682
      %v684 = vpop.xlane.xlu0 %683
      %v685 = vsel %vm662, %v681, 0.0
      %686 = vadd.xlane.f32.xlu0 %v685
      %v687 = vpop.xlane.xlu0 %686
      %v688 = vmul.f32 %v684, %v675
      %v689 = vmul.f32 %v687, %v675
      %v690 = vadd.f32 %v688, 1e-05
      %v691 = vadd.f32 %v689, 1e-05
      %v692 = vrsqrt.pop %v690
      %v693 = vmul.f32 %v692, %v690
      %v694 = vmul.f32 %v693, %v692
      %v695 = vmul.f32 0.5, %v694
      %v696 = vsub.f32 1.5, %v695
      %v697 = vmul.f32 %v692, %v696
      %vm698 = vweird.f32 %v690
      %vm699 = vweird.f32 %v692
      %vm700 = vmor %vm698, %vm699
      %v701 = vsel %vm700, %v692, %v697
      %v702 = vrsqrt.pop %v691
      %v703 = vmul.f32 %v702, %v691
      %v704 = vmul.f32 %v703, %v702
      %v705 = vmul.f32 0.5, %v704
      %v706 = vsub.f32 1.5, %v705
      %v707 = vmul.f32 %v702, %v706
      %vm708 = vweird.f32 %v691
      %vm709 = vweird.f32 %v702
      %vm710 = vmor %vm708, %vm709
      %v711 = vsel %vm710, %v702, %v707
      %v712 = vmul.f32 %v678, %v701
      %v713 = vmul.f32 %v679, %v711
      %v715 = vperm.slane %v660, 0
      %v717 = vmul.f32 %v712, %v715
      %v718 = vmul.f32 %v713, %v715
      %v720 = vperm.slane %v661, 0
      %v722 = vadd.f32 %v717, %v720
      %v723 = vadd.f32 %v718, %v720
      %v724 = vpack.c.bf16 %v723, %v722
      %v725 = vld [vmem:[%s608] sm:$0xf]
      %v726 = vld [vmem:[%s608 + $0x4] sm:$0xf]
      %v727 = vld [vmem:[%s608 + $0x8] sm:$0xf]
      %v728 = vld [vmem:[%s608 + $0xc] sm:$0xf]
      %v729 = vld [vmem:[%s611] sm:$0x1]
      %v731 = vperm.slane %v729, 0
      %v737 = vunpack.c.l.b16 %v725
      %v738 = vunpack.c.l.b16 %v726
      %v739 = vunpack.c.l.b16 %v727
      %v740 = vunpack.c.l.b16 %v728
      %v741 = vpack.c.b16 %v738, %v737
      %v742 = vpack.c.b16 %v740, %v739
      %v746 = vsel %vm662, %v724, 0
      %748 = vmatpush.bf16.msra.mxu0 0
      %749 = vmatpush.bf16.msra.mxu0 0
      %750 = vmatpush.bf16.msra.mxu0 0
      %751 = vmatpush.bf16.msra.mxu0 0
      %752 = vmatpush.bf16.msra.mxu0 0
      %753 = vmatpush.bf16.msra.mxu0 0
      %754 = vmatpush.bf16.msra.mxu0 %v742
      %755 = vmatpush.bf16.msra.mxu0 %v741
      %756 = vmatmul.bf16.gmra.mxu0 %v746
      %v757 = vpop.f32.mrf.mxu0
      %v758 = vadd.f32 %v731, %v757
      %v759 = vpop.f32.mrf.mxu0
      %v760 = vadd.f32 %v731, %v759
      %761 = vdwg.mxu0
      %v762 = vpack.c.bf16 %v758, %v758
      %v763 = vpack.c.bf16 %v760, %v760
      %v764 = vlaneseq
      %v765 = vshrl.u32 %v764, 7
      %v766 = vlaneseq
      %v767 = vand.u32 %v766, 127
      %vm768 = vcmp.le.s32.totalorder %v767, %v765
      %v770 = vunpack.c.l.b16 %v762
      %v771 = vpack.c.b16 %v770, %v770
      %772 = vrot.lane.b32.xlu0 %v771, 96
      %v773 = vpop.permute.xlu0 %772
      %vm774 = vcmask 64512
      %v776 = vsel %vm774, %v762, 0
      %v779 = vsel %vm774, %v773, 0
      %781 = vmatpush.bf16.xpose.msra.mxu0 0
      %782 = vmatpush.bf16.xpose.msra.mxu0 0
      %783 = vmatpush.bf16.xpose.msra.mxu0 0
      %784 = vmatpush.bf16.xpose.msra.mxu0 0
      %785 = vmatpush.bf16.xpose.msra.mxu0 0
      %786 = vmatpush.bf16.xpose.msra.mxu0 0
      %787 = vmatpush.bf16.xpose.msra.mxu0 0
      %788 = vmatpush.bf16.xpose.msra.mxu0 %v779
      %789 = vmatmul.bf16.gmra.mxu0 %v776
      %v790 = vpop.f32.mrf.mxu0
      %v791 = vadd.f32 0.0, %v790
      %v792 = vpop.f32.mrf.mxu0
      %793 = vdwg.mxu0
      %v795 = vunpack.c.l.b16 %v763
      %v796 = vpack.c.b16 %v795, %v795
      %797 = vrot.lane.b32.xlu0 %v796, 96
      %v798 = vpop.permute.xlu0 %797
      %v800 = vsel %vm774, %v763, 0
      %v803 = vsel %vm774, %v798, 0
      %805 = vmatpush.bf16.xpose.msra.mxu0 0
      %806 = vmatpush.bf16.xpose.msra.mxu0 0
      %807 = vmatpush.bf16.xpose.msra.mxu0 0
      %808 = vmatpush.bf16.xpose.msra.mxu0 0
      %809 = vmatpush.bf16.xpose.msra.mxu0 0
      %810 = vmatpush.bf16.xpose.msra.mxu0 0
      %811 = vmatpush.bf16.xpose.msra.mxu0 0
      %812 = vmatpush.bf16.xpose.msra.mxu0 %v803
      %813 = vmatmul.bf16.gmra.mxu0 %v800
      %v814 = vpop.f32.mrf.mxu0
      %v815 = vadd.f32 0.0, %v814
      %v816 = vpop.f32.mrf.mxu0
      %817 = vdwg.mxu0
      %v818 = vmul.f32 %v791, 0.35355338
      %v819 = vmul.f32 %v815, 0.35355338
      %v820 = vsel %vm768, 1, 0
      %vm821 = vcmp.eq.s32.totalorder %v820, 1
      %v822 = vsel %vm821, %v818, -1e+30
      %v823 = vsel %vm821, %v819, -1e+30
      %v824 = vsel %vm774, %v822, -inf
      %825 = vmax.xlane.f32.xlu0 %v824
      %v826 = vpop.xlane.xlu0 %825
      %v827 = vsel %vm774, %v823, -inf
      %828 = vmax.xlane.f32.xlu0 %v827
      %v829 = vpop.xlane.xlu0 %828
      %v830 = vsub.f32 %v822, %v826
      %v831 = vsub.f32 %v823, %v829
      %v832 = vmul.f32 %v830, 1.442695
      %v833 = vpow.pop %v832
      %v834 = vmul.f32 %v831, 1.442695
      %v835 = vpow.pop %v834
      %v836 = vsel %vm774, %v833, 0.0
      %837 = vadd.xlane.f32.xlu0 %v836
      %v838 = vpop.xlane.xlu0 %837
      %v839 = vsel %vm774, %v835, 0.0
      %840 = vadd.xlane.f32.xlu0 %v839
      %v841 = vpop.xlane.xlu0 %840
      %v842 = vrcp.pop %v838
      %v843 = vrcp.pop %v841
      %v844 = vmul.f32 %v833, %v842
      %v845 = vmul.f32 %v835, %v843
      %v846 = vpack.c.bf16 %v844, %v844
      %v847 = vpack.c.bf16 %v845, %v845
      %848 = vrot.lane.b32.xlu0 %v771, 64
      %v849 = vpop.permute.xlu0 %848
      %v851 = vsel %vm774, %v846, 0
      %vm853 = vcmask 1043456
      %v855 = vsel %vm853, %v849, 0
      %857 = vmatpush.bf16.msra.mxu0 0
      %858 = vmatpush.bf16.msra.mxu0 0
      %859 = vmatpush.bf16.msra.mxu0 0
      %860 = vmatpush.bf16.msra.mxu0 0
      %861 = vmatpush.bf16.msra.mxu0 0
      %862 = vmatpush.bf16.msra.mxu0 0
      %863 = vmatpush.bf16.msra.mxu0 0
      %864 = vmatpush.bf16.msra.mxu0 %v855
      %865 = vmatmul.bf16.gmra.mxu0 %v851
      %v866 = vpop.f32.mrf.mxu0
      %v867 = vadd.f32 0.0, %v866
      %v868 = vpop.f32.mrf.mxu0
      %869 = vdwg.mxu0
      %870 = vrot.lane.b32.xlu0 %v796, 64
      %v871 = vpop.permute.xlu0 %870
      %v873 = vsel %vm774, %v847, 0
      %v876 = vsel %vm853, %v871, 0
      %878 = vmatpush.bf16.msra.mxu0 0
      %879 = vmatpush.bf16.msra.mxu0 0
      %880 = vmatpush.bf16.msra.mxu0 0
      %881 = vmatpush.bf16.msra.mxu0 0
      %882 = vmatpush.bf16.msra.mxu0 0
      %883 = vmatpush.bf16.msra.mxu0 0
      %884 = vmatpush.bf16.msra.mxu0 0
      %885 = vmatpush.bf16.msra.mxu0 %v876
      %886 = vmatmul.bf16.gmra.mxu0 %v873
      %v887 = vpop.f32.mrf.mxu0
      %v888 = vadd.f32 0.0, %v887
      %v889 = vpop.f32.mrf.mxu0
      %890 = vdwg.mxu0
      %891 = vrot.lane.b32.xlu0 %v771, 120
      %v892 = vpop.permute.xlu0 %891
      %893 = vrot.lane.b32.xlu0 %v771, 88
      %v894 = vpop.permute.xlu0 %893
      %v896 = vsel %vm774, %v892, 0
      %v899 = vsel %vm774, %v894, 0
      %901 = vmatpush.bf16.xpose.msra.mxu0 0
      %902 = vmatpush.bf16.xpose.msra.mxu0 0
      %903 = vmatpush.bf16.xpose.msra.mxu0 0
      %904 = vmatpush.bf16.xpose.msra.mxu0 0
      %905 = vmatpush.bf16.xpose.msra.mxu0 0
      %906 = vmatpush.bf16.xpose.msra.mxu0 0
      %907 = vmatpush.bf16.xpose.msra.mxu0 0
      %908 = vmatpush.bf16.xpose.msra.mxu0 %v899
      %909 = vmatmul.bf16.gmra.mxu0 %v896
      %v910 = vpop.f32.mrf.mxu0
      %v911 = vadd.f32 0.0, %v910
      %v912 = vpop.f32.mrf.mxu0
      %913 = vdwg.mxu0
      %914 = vrot.lane.b32.xlu0 %v796, 120
      %v915 = vpop.permute.xlu0 %914
      %916 = vrot.lane.b32.xlu0 %v796, 88
      %v917 = vpop.permute.xlu0 %916
      %v919 = vsel %vm774, %v915, 0
      %v922 = vsel %vm774, %v917, 0
      %924 = vmatpush.bf16.xpose.msra.mxu0 0
      %925 = vmatpush.bf16.xpose.msra.mxu0 0
      %926 = vmatpush.bf16.xpose.msra.mxu0 0
      %927 = vmatpush.bf16.xpose.msra.mxu0 0
      %928 = vmatpush.bf16.xpose.msra.mxu0 0
      %929 = vmatpush.bf16.xpose.msra.mxu0 0
      %930 = vmatpush.bf16.xpose.msra.mxu0 0
      %931 = vmatpush.bf16.xpose.msra.mxu0 %v922
      %932 = vmatmul.bf16.gmra.mxu0 %v919
      %v933 = vpop.f32.mrf.mxu0
      %v934 = vadd.f32 0.0, %v933
      %v935 = vpop.f32.mrf.mxu0
      %936 = vdwg.mxu0
      %v937 = vmul.f32 %v911, 0.35355338
      %v938 = vmul.f32 %v934, 0.35355338
      %v939 = vsel %vm821, %v937, -1e+30
      %v940 = vsel %vm821, %v938, -1e+30
      %v941 = vsel %vm774, %v939, -inf
      %942 = vmax.xlane.f32.xlu0 %v941
      %v943 = vpop.xlane.xlu0 %942
      %v944 = vsel %vm774, %v940, -inf
      %945 = vmax.xlane.f32.xlu0 %v944
      %v946 = vpop.xlane.xlu0 %945
      %v947 = vsub.f32 %v939, %v943
      %v948 = vsub.f32 %v940, %v946
      %v949 = vmul.f32 %v947, 1.442695
      %v950 = vpow.pop %v949
      %v951 = vmul.f32 %v948, 1.442695
      %v952 = vpow.pop %v951
      %v953 = vsel %vm774, %v950, 0.0
      %954 = vadd.xlane.f32.xlu0 %v953
      %v955 = vpop.xlane.xlu0 %954
      %v956 = vsel %vm774, %v952, 0.0
      %957 = vadd.xlane.f32.xlu0 %v956
      %v958 = vpop.xlane.xlu0 %957
      %v959 = vrcp.pop %v955
      %v960 = vrcp.pop %v958
      %v961 = vmul.f32 %v950, %v959
      %v962 = vmul.f32 %v952, %v960
      %v963 = vpack.c.bf16 %v961, %v961
      %v964 = vpack.c.bf16 %v962, %v962
      %965 = vrot.lane.b32.xlu0 %v771, 56
      %v966 = vpop.permute.xlu0 %965
      %v968 = vsel %vm774, %v963, 0
      %v971 = vsel %vm853, %v966, 0
      %973 = vmatpush.bf16.msra.mxu0 0
      %974 = vmatpush.bf16.msra.mxu0 0
      %975 = vmatpush.bf16.msra.mxu0 0
      %976 = vmatpush.bf16.msra.mxu0 0
      %977 = vmatpush.bf16.msra.mxu0 0
      %978 = vmatpush.bf16.msra.mxu0 0
      %979 = vmatpush.bf16.msra.mxu0 0
      %980 = vmatpush.bf16.msra.mxu0 %v971
      %981 = vmatmul.bf16.gmra.mxu0 %v968
      %v982 = vpop.f32.mrf.mxu0
      %v983 = vadd.f32 0.0, %v982
      %v984 = vpop.f32.mrf.mxu0
      %985 = vdwg.mxu0
      %986 = vrot.lane.b32.xlu0 %v796, 56
      %v987 = vpop.permute.xlu0 %986
      %v989 = vsel %vm774, %v964, 0
      %v992 = vsel %vm853, %v987, 0
      %994 = vmatpush.bf16.msra.mxu0 0
      %995 = vmatpush.bf16.msra.mxu0 0
      %996 = vmatpush.bf16.msra.mxu0 0
      %997 = vmatpush.bf16.msra.mxu0 0
      %998 = vmatpush.bf16.msra.mxu0 0
      %999 = vmatpush.bf16.msra.mxu0 0
      %1000 = vmatpush.bf16.msra.mxu0 0
      %1001 = vmatpush.bf16.msra.mxu0 %v992
      %1002 = vmatmul.bf16.gmra.mxu0 %v989
      %v1003 = vpop.f32.mrf.mxu0
      %v1004 = vadd.f32 0.0, %v1003
      %v1005 = vpop.f32.mrf.mxu0
      %1006 = vdwg.mxu0
      %1007 = vrot.lane.b32.xlu0 %v771, 112
      %v1008 = vpop.permute.xlu0 %1007
      %1009 = vrot.lane.b32.xlu0 %v771, 80
      %v1010 = vpop.permute.xlu0 %1009
      %v1012 = vsel %vm774, %v1008, 0
      %v1015 = vsel %vm774, %v1010, 0
      %1017 = vmatpush.bf16.xpose.msra.mxu0 0
      %1018 = vmatpush.bf16.xpose.msra.mxu0 0
      %1019 = vmatpush.bf16.xpose.msra.mxu0 0
      %1020 = vmatpush.bf16.xpose.msra.mxu0 0
      %1021 = vmatpush.bf16.xpose.msra.mxu0 0
      %1022 = vmatpush.bf16.xpose.msra.mxu0 0
      %1023 = vmatpush.bf16.xpose.msra.mxu0 0
      %1024 = vmatpush.bf16.xpose.msra.mxu0 %v1015
      %1025 = vmatmul.bf16.gmra.mxu0 %v1012
      %v1026 = vpop.f32.mrf.mxu0
      %v1027 = vadd.f32 0.0, %v1026
      %v1028 = vpop.f32.mrf.mxu0
      %1029 = vdwg.mxu0
      %1030 = vrot.lane.b32.xlu0 %v796, 112
      %v1031 = vpop.permute.xlu0 %1030
      %1032 = vrot.lane.b32.xlu0 %v796, 80
      %v1033 = vpop.permute.xlu0 %1032
      %v1035 = vsel %vm774, %v1031, 0
      %v1038 = vsel %vm774, %v1033, 0
      %1040 = vmatpush.bf16.xpose.msra.mxu0 0
      %1041 = vmatpush.bf16.xpose.msra.mxu0 0
      %1042 = vmatpush.bf16.xpose.msra.mxu0 0
      %1043 = vmatpush.bf16.xpose.msra.mxu0 0
      %1044 = vmatpush.bf16.xpose.msra.mxu0 0
      %1045 = vmatpush.bf16.xpose.msra.mxu0 0
      %1046 = vmatpush.bf16.xpose.msra.mxu0 0
      %1047 = vmatpush.bf16.xpose.msra.mxu0 %v1038
      %1048 = vmatmul.bf16.gmra.mxu0 %v1035
      %v1049 = vpop.f32.mrf.mxu0
      %v1050 = vadd.f32 0.0, %v1049
      %v1051 = vpop.f32.mrf.mxu0
      %1052 = vdwg.mxu0
      %v1053 = vmul.f32 %v1027, 0.35355338
      %v1054 = vmul.f32 %v1050, 0.35355338
      %v1055 = vsel %vm821, %v1053, -1e+30
      %v1056 = vsel %vm821, %v1054, -1e+30
      %v1057 = vsel %vm774, %v1055, -inf
      %1058 = vmax.xlane.f32.xlu0 %v1057
      %v1059 = vpop.xlane.xlu0 %1058
      %v1060 = vsel %vm774, %v1056, -inf
      %1061 = vmax.xlane.f32.xlu0 %v1060
      %v1062 = vpop.xlane.xlu0 %1061
      %v1063 = vsub.f32 %v1055, %v1059
      %v1064 = vsub.f32 %v1056, %v1062
      %v1065 = vmul.f32 %v1063, 1.442695
      %v1066 = vpow.pop %v1065
      %v1067 = vmul.f32 %v1064, 1.442695
      %v1068 = vpow.pop %v1067
      %v1069 = vsel %vm774, %v1066, 0.0
      %1070 = vadd.xlane.f32.xlu0 %v1069
      %v1071 = vpop.xlane.xlu0 %1070
      %v1072 = vsel %vm774, %v1068, 0.0
      %1073 = vadd.xlane.f32.xlu0 %v1072
      %v1074 = vpop.xlane.xlu0 %1073
      %v1075 = vrcp.pop %v1071
      %v1076 = vrcp.pop %v1074
      %v1077 = vmul.f32 %v1066, %v1075
      %v1078 = vmul.f32 %v1068, %v1076
      %v1079 = vpack.c.bf16 %v1077, %v1077
      %v1080 = vpack.c.bf16 %v1078, %v1078
      %1081 = vrot.lane.b32.xlu0 %v771, 48
      %v1082 = vpop.permute.xlu0 %1081
      %v1084 = vsel %vm774, %v1079, 0
      %v1087 = vsel %vm853, %v1082, 0
      %1089 = vmatpush.bf16.msra.mxu0 0
      %1090 = vmatpush.bf16.msra.mxu0 0
      %1091 = vmatpush.bf16.msra.mxu0 0
      %1092 = vmatpush.bf16.msra.mxu0 0
      %1093 = vmatpush.bf16.msra.mxu0 0
      %1094 = vmatpush.bf16.msra.mxu0 0
      %1095 = vmatpush.bf16.msra.mxu0 0
      %1096 = vmatpush.bf16.msra.mxu0 %v1087
      %1097 = vmatmul.bf16.gmra.mxu0 %v1084
      %v1098 = vpop.f32.mrf.mxu0
      %v1099 = vadd.f32 0.0, %v1098
      %v1100 = vpop.f32.mrf.mxu0
      %1101 = vdwg.mxu0
      %1102 = vrot.lane.b32.xlu0 %v796, 48
      %v1103 = vpop.permute.xlu0 %1102
      %v1105 = vsel %vm774, %v1080, 0
      %v1108 = vsel %vm853, %v1103, 0
      %1110 = vmatpush.bf16.msra.mxu0 0
      %1111 = vmatpush.bf16.msra.mxu0 0
      %1112 = vmatpush.bf16.msra.mxu0 0
      %1113 = vmatpush.bf16.msra.mxu0 0
      %1114 = vmatpush.bf16.msra.mxu0 0
      %1115 = vmatpush.bf16.msra.mxu0 0
      %1116 = vmatpush.bf16.msra.mxu0 0
      %1117 = vmatpush.bf16.msra.mxu0 %v1108
      %1118 = vmatmul.bf16.gmra.mxu0 %v1105
      %v1119 = vpop.f32.mrf.mxu0
      %v1120 = vadd.f32 0.0, %v1119
      %v1121 = vpop.f32.mrf.mxu0
      %1122 = vdwg.mxu0
      %1123 = vrot.lane.b32.xlu0 %v771, 104
      %v1124 = vpop.permute.xlu0 %1123
      %1125 = vrot.lane.b32.xlu0 %v771, 72
      %v1126 = vpop.permute.xlu0 %1125
      %v1128 = vsel %vm774, %v1124, 0
      %v1131 = vsel %vm774, %v1126, 0
      %1133 = vmatpush.bf16.xpose.msra.mxu0 0
      %1134 = vmatpush.bf16.xpose.msra.mxu0 0
      %1135 = vmatpush.bf16.xpose.msra.mxu0 0
      %1136 = vmatpush.bf16.xpose.msra.mxu0 0
      %1137 = vmatpush.bf16.xpose.msra.mxu0 0
      %1138 = vmatpush.bf16.xpose.msra.mxu0 0
      %1139 = vmatpush.bf16.xpose.msra.mxu0 0
      %1140 = vmatpush.bf16.xpose.msra.mxu0 %v1131
      %1141 = vmatmul.bf16.gmra.mxu0 %v1128
      %v1142 = vpop.f32.mrf.mxu0
      %v1143 = vadd.f32 0.0, %v1142
      %v1144 = vpop.f32.mrf.mxu0
      %1145 = vdwg.mxu0
      %1146 = vrot.lane.b32.xlu0 %v796, 104
      %v1147 = vpop.permute.xlu0 %1146
      %1148 = vrot.lane.b32.xlu0 %v796, 72
      %v1149 = vpop.permute.xlu0 %1148
      %v1151 = vsel %vm774, %v1147, 0
      %v1154 = vsel %vm774, %v1149, 0
      %1156 = vmatpush.bf16.xpose.msra.mxu0 0
      %1157 = vmatpush.bf16.xpose.msra.mxu0 0
      %1158 = vmatpush.bf16.xpose.msra.mxu0 0
      %1159 = vmatpush.bf16.xpose.msra.mxu0 0
      %1160 = vmatpush.bf16.xpose.msra.mxu0 0
      %1161 = vmatpush.bf16.xpose.msra.mxu0 0
      %1162 = vmatpush.bf16.xpose.msra.mxu0 0
      %1163 = vmatpush.bf16.xpose.msra.mxu0 %v1154
      %1164 = vmatmul.bf16.gmra.mxu0 %v1151
      %v1165 = vpop.f32.mrf.mxu0
      %v1166 = vadd.f32 0.0, %v1165
      %v1167 = vpop.f32.mrf.mxu0
      %1168 = vdwg.mxu0
      %v1169 = vmul.f32 %v1143, 0.35355338
      %v1170 = vmul.f32 %v1166, 0.35355338
      %v1171 = vsel %vm821, %v1169, -1e+30
      %v1172 = vsel %vm821, %v1170, -1e+30
      %v1173 = vsel %vm774, %v1171, -inf
      %1174 = vmax.xlane.f32.xlu0 %v1173
      %v1175 = vpop.xlane.xlu0 %1174
      %v1176 = vsel %vm774, %v1172, -inf
      %1177 = vmax.xlane.f32.xlu0 %v1176
      %v1178 = vpop.xlane.xlu0 %1177
      %v1179 = vsub.f32 %v1171, %v1175
      %v1180 = vsub.f32 %v1172, %v1178
      %v1181 = vmul.f32 %v1179, 1.442695
      %v1182 = vpow.pop %v1181
      %v1183 = vmul.f32 %v1180, 1.442695
      %v1184 = vpow.pop %v1183
      %v1185 = vsel %vm774, %v1182, 0.0
      %1186 = vadd.xlane.f32.xlu0 %v1185
      %v1187 = vpop.xlane.xlu0 %1186
      %v1188 = vsel %vm774, %v1184, 0.0
      %1189 = vadd.xlane.f32.xlu0 %v1188
      %v1190 = vpop.xlane.xlu0 %1189
      %v1191 = vrcp.pop %v1187
      %v1192 = vrcp.pop %v1190
      %v1193 = vmul.f32 %v1182, %v1191
      %v1194 = vmul.f32 %v1184, %v1192
      %v1195 = vpack.c.bf16 %v1193, %v1193
      %v1196 = vpack.c.bf16 %v1194, %v1194
      %1197 = vrot.lane.b32.xlu0 %v771, 40
      %v1198 = vpop.permute.xlu0 %1197
      %v1200 = vsel %vm774, %v1195, 0
      %v1203 = vsel %vm853, %v1198, 0
      %1205 = vmatpush.bf16.msra.mxu0 0
      %1206 = vmatpush.bf16.msra.mxu0 0
      %1207 = vmatpush.bf16.msra.mxu0 0
      %1208 = vmatpush.bf16.msra.mxu0 0
      %1209 = vmatpush.bf16.msra.mxu0 0
      %1210 = vmatpush.bf16.msra.mxu0 0
      %1211 = vmatpush.bf16.msra.mxu0 0
      %1212 = vmatpush.bf16.msra.mxu0 %v1203
      %1213 = vmatmul.bf16.gmra.mxu0 %v1200
      %v1214 = vpop.f32.mrf.mxu0
      %v1215 = vadd.f32 0.0, %v1214
      %v1216 = vpop.f32.mrf.mxu0
      %1217 = vdwg.mxu0
      %1218 = vrot.lane.b32.xlu0 %v796, 40
      %v1219 = vpop.permute.xlu0 %1218
      %v1221 = vsel %vm774, %v1196, 0
      %v1224 = vsel %vm853, %v1219, 0
      %1226 = vmatpush.bf16.msra.mxu0 0
      %1227 = vmatpush.bf16.msra.mxu0 0
      %1228 = vmatpush.bf16.msra.mxu0 0
      %1229 = vmatpush.bf16.msra.mxu0 0
      %1230 = vmatpush.bf16.msra.mxu0 0
      %1231 = vmatpush.bf16.msra.mxu0 0
      %1232 = vmatpush.bf16.msra.mxu0 0
      %1233 = vmatpush.bf16.msra.mxu0 %v1224
      %1234 = vmatmul.bf16.gmra.mxu0 %v1221
      %v1235 = vpop.f32.mrf.mxu0
      %v1236 = vadd.f32 0.0, %v1235
      %v1237 = vpop.f32.mrf.mxu0
      %1238 = vdwg.mxu0
      %1241 = vrot.lane.b32.xlu0 %v983, 8
      %v1242 = vpop.permute.xlu0 %1241
      %1243 = vrot.lane.b32.xlu0 %v1004, 8
      %v1244 = vpop.permute.xlu0 %1243
      %1249 = vrot.lane.b32.xlu0 %v1099, 16
      %v1250 = vpop.permute.xlu0 %1249
      %1251 = vrot.lane.b32.xlu0 %v1120, 16
      %v1252 = vpop.permute.xlu0 %1251
      %1257 = vrot.lane.b32.xlu0 %v1215, 24
      %v1258 = vpop.permute.xlu0 %1257
      %1259 = vrot.lane.b32.xlu0 %v1236, 24
      %v1260 = vpop.permute.xlu0 %1259
      %v1263 = vsel %vm774, %v867, %v1242
      %v1264 = vsel %vm774, %v888, %v1244
      %vm1265 = vcmask 130048
      %v1266 = vsel %vm1265, %v1263, %v1250
      %v1267 = vsel %vm1265, %v1264, %v1252
      %vm1268 = vcmask 195584
      %v1269 = vsel %vm1268, %v1266, %v1258
      %v1270 = vsel %vm1268, %v1267, %v1260
      %v1271 = vpack.c.bf16 %v1270, %v1269
      %v1272 = vld [vmem:[%s616] sm:$0xf]
      %v1273 = vld [vmem:[%s616 + $0x4] sm:$0xf]
      %v1274 = vld [vmem:[%s616 + $0x8] sm:$0xf]
      %v1275 = vld [vmem:[%s616 + $0xc] sm:$0xf]
      %v1276 = vld [vmem:[%s619] sm:$0x1]
      %v1278 = vperm.slane %v1276, 0
      %v1284 = vunpack.c.l.b16 %v1272
      %v1285 = vunpack.c.l.b16 %v1273
      %v1286 = vunpack.c.l.b16 %v1274
      %v1287 = vunpack.c.l.b16 %v1275
      %v1288 = vpack.c.b16 %v1285, %v1284
      %v1289 = vpack.c.b16 %v1287, %v1286
      %v1293 = vsel %vm662, %v1271, 0
      %1295 = vmatpush.bf16.msra.mxu0 0
      %1296 = vmatpush.bf16.msra.mxu0 0
      %1297 = vmatpush.bf16.msra.mxu0 0
      %1298 = vmatpush.bf16.msra.mxu0 0
      %1299 = vmatpush.bf16.msra.mxu0 0
      %1300 = vmatpush.bf16.msra.mxu0 0
      %1301 = vmatpush.bf16.msra.mxu0 %v1289
      %1302 = vmatpush.bf16.msra.mxu0 %v1288
      %1303 = vmatmul.bf16.gmra.mxu0 %v1293
      %v1304 = vpop.f32.mrf.mxu0
      %v1305 = vadd.f32 %v1278, %v1304
      %v1306 = vpop.f32.mrf.mxu0
      %v1307 = vadd.f32 %v1278, %v1306
      %1308 = vdwg.mxu0
      %v1309 = vadd.f32 %v658, %v1305
      %v1310 = vadd.f32 %v659, %v1307
      %v1311 = vld [vmem:[%s622] sm:$0x1]
      %v1312 = vld [vmem:[%s625] sm:$0x1]
      %v1313 = vsel %vm662, %v1309, 0.0
      %1314 = vadd.xlane.f32.xlu0 %v1313
      %v1315 = vpop.xlane.xlu0 %1314
      %v1316 = vsel %vm662, %v1310, 0.0
      %1317 = vadd.xlane.f32.xlu0 %v1316
      %v1318 = vpop.xlane.xlu0 %1317
      %v1319 = vmul.f32 %v1315, %v675
      %v1320 = vmul.f32 %v1318, %v675
      %v1321 = vsub.f32 %v1309, %v1319
      %v1322 = vsub.f32 %v1310, %v1320
      %v1323 = vmul.f32 %v1321, %v1321
      %v1324 = vmul.f32 %v1322, %v1322
      %v1325 = vsel %vm662, %v1323, 0.0
      %1326 = vadd.xlane.f32.xlu0 %v1325
      %v1327 = vpop.xlane.xlu0 %1326
      %v1328 = vsel %vm662, %v1324, 0.0
      %1329 = vadd.xlane.f32.xlu0 %v1328
      %v1330 = vpop.xlane.xlu0 %1329
      %v1331 = vmul.f32 %v1327, %v675
      %v1332 = vmul.f32 %v1330, %v675
      %v1333 = vadd.f32 %v1331, 1e-05
      %v1334 = vadd.f32 %v1332, 1e-05
      %v1335 = vrsqrt.pop %v1333
      %v1336 = vmul.f32 %v1335, %v1333
      %v1337 = vmul.f32 %v1336, %v1335
      %v1338 = vmul.f32 0.5, %v1337
      %v1339 = vsub.f32 1.5, %v1338
      %v1340 = vmul.f32 %v1335, %v1339
      %vm1341 = vweird.f32 %v1333
      %vm1342 = vweird.f32 %v1335
      %vm1343 = vmor %vm1341, %vm1342
      %v1344 = vsel %vm1343, %v1335, %v1340
      %v1345 = vrsqrt.pop %v1334
      %v1346 = vmul.f32 %v1345, %v1334
      %v1347 = vmul.f32 %v1346, %v1345
      %v1348 = vmul.f32 0.5, %v1347
      %v1349 = vsub.f32 1.5, %v1348
      %v1350 = vmul.f32 %v1345, %v1349
      %vm1351 = vweird.f32 %v1334
      %vm1352 = vweird.f32 %v1345
      %vm1353 = vmor %vm1351, %vm1352
      %v1354 = vsel %vm1353, %v1345, %v1350
      %v1355 = vmul.f32 %v1321, %v1344
      %v1356 = vmul.f32 %v1322, %v1354
      %v1358 = vperm.slane %v1311, 0
      %v1360 = vmul.f32 %v1355, %v1358
      %v1361 = vmul.f32 %v1356, %v1358
      %v1363 = vperm.slane %v1312, 0
      %v1365 = vadd.f32 %v1360, %v1363
      %v1366 = vadd.f32 %v1361, %v1363
      %v1367 = vpack.c.bf16 %v1366, %v1365
      %v1368 = vld [vmem:[%s630] sm:$0xf]
      %v1369 = vld [vmem:[%s630 + $0x4] sm:$0xf]
      %v1370 = vld [vmem:[%s630 + $0x8] sm:$0xf]
      %v1371 = vld [vmem:[%s630 + $0xc] sm:$0xf]
      %v1372 = vld [vmem:[%s633] sm:$0x1]
      %v1374 = vperm.slane %v1372, 0
      %v1380 = vunpack.c.l.b16 %v1368
      %v1381 = vunpack.c.l.b16 %v1369
      %v1382 = vunpack.c.l.b16 %v1370
      %v1383 = vunpack.c.l.b16 %v1371
      %v1384 = vpack.c.b16 %v1381, %v1380
      %v1385 = vpack.c.b16 %v1383, %v1382
      %v1389 = vsel %vm662, %v1367, 0
      %1391 = vmatpush.bf16.msra.mxu0 0
      %1392 = vmatpush.bf16.msra.mxu0 0
      %1393 = vmatpush.bf16.msra.mxu0 0
      %1394 = vmatpush.bf16.msra.mxu0 0
      %1395 = vmatpush.bf16.msra.mxu0 0
      %1396 = vmatpush.bf16.msra.mxu0 0
      %1397 = vmatpush.bf16.msra.mxu0 %v1385
      %1398 = vmatpush.bf16.msra.mxu0 %v1384
      %1399 = vmatmul.bf16.gmra.mxu0 %v1389
      %v1400 = vpop.f32.mrf.mxu0
      %v1401 = vadd.f32 %v1374, %v1400
      %v1402 = vpop.f32.mrf.mxu0
      %v1403 = vadd.f32 %v1374, %v1402
      %1404 = vdwg.mxu0
      %v1405 = vmul.f32 %v1401, %v1401
      %v1406 = vmul.f32 %v1403, %v1403
      %v1407 = vmul.f32 %v1401, %v1405
      %v1408 = vmul.f32 %v1403, %v1406
      %v1409 = vmul.f32 %v1407, 0.044715
      %v1410 = vmul.f32 %v1408, 0.044715
      %v1411 = vadd.f32 %v1401, %v1409
      %v1412 = vadd.f32 %v1403, %v1410
      %v1413 = vmul.f32 %v1411, 0.7978846
      %v1414 = vmul.f32 %v1412, 0.7978846
      %v1415 = vtanh.pop %v1413
      %v1416 = vtanh.pop %v1414
      %v1417 = vadd.f32 %v1415, 1.0
      %v1418 = vadd.f32 %v1416, 1.0
      %v1419 = vmul.f32 %v1417, 0.5
      %v1420 = vmul.f32 %v1418, 0.5
      %v1421 = vmul.f32 %v1401, %v1419
      %v1422 = vmul.f32 %v1403, %v1420
      %v1423 = vpack.c.bf16 %v1422, %v1421
      %v1424 = vld [vmem:[%s638] sm:$0xf]
      %v1425 = vld [vmem:[%s638 + $0x4] sm:$0xf]
      %v1426 = vld [vmem:[%s638 + $0x8] sm:$0xf]
      %v1427 = vld [vmem:[%s638 + $0xc] sm:$0xf]
      %v1428 = vld [vmem:[%s638 + $0x10] sm:$0xf]
      %v1429 = vld [vmem:[%s638 + $0x14] sm:$0xf]
      %v1430 = vld [vmem:[%s638 + $0x18] sm:$0xf]
      %v1431 = vld [vmem:[%s638 + $0x1c] sm:$0xf]
      %v1432 = vld [vmem:[%s641] sm:$0x1]
      %v1434 = vperm.slane %v1432, 0
      %v1444 = vunpack.c.l.b16 %v1424
      %v1445 = vunpack.c.l.b16 %v1425
      %v1446 = vunpack.c.l.b16 %v1426
      %v1447 = vunpack.c.l.b16 %v1427
      %v1448 = vunpack.c.l.b16 %v1428
      %v1449 = vunpack.c.l.b16 %v1429
      %v1450 = vunpack.c.l.b16 %v1430
      %v1451 = vunpack.c.l.b16 %v1431
      %v1452 = vpack.c.b16 %v1445, %v1444
      %v1453 = vpack.c.b16 %v1447, %v1446
      %v1454 = vpack.c.b16 %v1449, %v1448
      %v1455 = vpack.c.b16 %v1451, %v1450
      %vm1460 = vcmask 523264
      %v1462 = vsel %vm1460, %v1423, 0
      %1464 = vmatpush.bf16.msra.mxu0 0
      %1465 = vmatpush.bf16.msra.mxu0 0
      %1466 = vmatpush.bf16.msra.mxu0 0
      %1467 = vmatpush.bf16.msra.mxu0 0
      %1468 = vmatpush.bf16.msra.mxu0 %v1455
      %1469 = vmatpush.bf16.msra.mxu0 %v1454
      %1470 = vmatpush.bf16.msra.mxu0 %v1453
      %1471 = vmatpush.bf16.msra.mxu0 %v1452
      %1472 = vmatmul.bf16.gmra.mxu0 %v1462
      %v1473 = vpop.f32.mrf.mxu0
      %v1474 = vadd.f32 %v1434, %v1473
      %v1475 = vpop.f32.mrf.mxu0
      %v1476 = vadd.f32 %v1434, %v1475
      %1477 = vdwg.mxu0
      %v1478 = vadd.f32 %v1309, %v1474
      %v1479 = vadd.f32 %v1310, %v1476
      %1480 = vst.msk [vmem:[#allocation2] sm:$0xff] %vm662, %v1478
      %1481 = vst.msk [vmem:[#allocation2 + $0x8] sm:$0xff] %vm662, %v1479
      %p1482 = scmp.eq.s32.totalorder %s29, 1
      // Predicated region
      $region77: #{gpt_forward.3} parent=71 // pred_check
        %p1483 = pneg %p1482
      $region78: #{gpt_forward.3} parent=71 // pred_check_branch
        %1485 = sbr.rel (%p1483) target = $region80
      $region79: #{gpt_forward.3} parent=71 // pred_region
        %1486 = vst.msk [vmem:[%s646] sm:$0xff] %vm662, %v1478
        %1487 = vst.msk [vmem:[%s646 + $0x8] sm:$0xff] %vm662, %v1479
      $region80: #{gpt_forward.3} parent=71 // pred_fallthru
        _
      %s1488 = smul.u32 2, %s28
      %p1489 = scmp.lt.s32.totalorder %s1488, 1
      %s1490 = scalar_select %p1489, %s1488, 1
      %s1491 = smul.addr %s1490, 8
      %s1492 = scalar_lea.vmem %s13, %s1491
      // Predicated region
      $region81: #{gpt_forward.3} parent=71 // pred_check
        %p1493 = pneg %p392
      $region82: #{gpt_forward.3} parent=71 // pred_check_branch
        %1495 = sbr.rel (%p1493) target = $region84
      $region83: #{gpt_forward.3} parent=71 // pred_region
        %s1496 = smul.u32 2, %s28
      $region84: #{gpt_forward.3} parent=71 // pred_fallthru
        _
      // Predicated region
      $region85: #{gpt_forward.3} parent=71 // pred_check
        %p1497 = pneg %p392
      $region86: #{gpt_forward.3} parent=71 // pred_check_branch
        %1499 = sbr.rel (%p1497) target = $region88
      $region87: #{gpt_forward.3} parent=71 // pred_region
        %s1500 = smul.u32 2, %s28
        %p1501 = scmp.lt.s32.totalorder %s1500, 1
        %s1502 = scalar_select %p1501, %s1500, 1
        %s1503 = smul.addr %s1502, 8
        %s1504 = scalar_lea.vmem %s13, %s1503
      $region88: #{gpt_forward.3} parent=71 // pred_fallthru
        _
    $region72: #{gpt_forward.3} parent=5 // pred_fallthru
      _
    %p1505 = scmp.le.s32.totalorder 2, %s19
    // Predicated region
    $region89: #{gpt_forward.3} parent=5 // pred_check
      %p1506 = pneg %p1505
    $region90: #{gpt_forward.3} parent=5 // pred_check_branch
      %1508 = sbr.rel (%p1506) target = $region92
    $region91: #{gpt_forward.3} parent=5 // pred_region
      %s1509 = ssub.s32 %s19, 2
    $region92: #{gpt_forward.3} parent=5 // pred_fallthru
      _
  $region6: #{gpt_forward.3} parent=0 // loop_footer
    %s23 = sadd.s32 1, %s19
  $region7: #{gpt_forward.3} parent=0 // loop_footer_branch
    %18 = sbr.rel target = $region3
  $region8: #{gpt_forward.3} parent=0 // loop_exit
    _

</llo_original>
